<compile_context>
chip_gen: v7x
topology: tpu7x:2x2x1
jax: 0.10.0
libtpu: 0.0.40
codegen_flags: <defaults>
</compile_context>

<pallas_src>
import jax
import jax.numpy as jnp
from jax.experimental import pallas as pl
from jax.experimental.pallas import tpu as pltpu

# --- small, module-consistent sizes -----------------------------------------
B     = 8     # batch size (>= 8 to fill the f32 sublane dimension)
H     = 32    # hidden_size == rnn_size == input_encoding_size
F_IMG = 64    # img_feat_size (fc_feat_size)
L     = 2     # num_layers
VOCAB = 50    # vocab_size  (embedding table has VOCAB + 1 rows)
SEQ   = 8     # caption length
NREG  = 6     # number of region features in V (unused by forward, kept for parity)

G4 = 4 * H        # 128 gate lanes per layer
ST = 2 * L * H    # 128 packed-state lanes: [h0 | h1 | c0 | c1]


# -----------------------------------------------------------------------------
# Fused Pallas kernel: the entire SEQ-step recurrence in one invocation.
# Everything stays VMEM/vreg-resident; two HBM writebacks total (out slab, state).
# -----------------------------------------------------------------------------
def _allimg_core_fused_kernel(xt_ref,        # (SEQ*B, H)   embedded tokens, pre-ReLU
                              vg_ref,        # (B, F_IMG)
                              wlinT_ref,     # (F_IMG, L*H) linear.weight^T
                              blin_ref,      # (1, L*H)     linear.bias
                              wx0T_ref,      # (H, 4H)      xt-columns of w_ih layer0, transposed
                              wv0T_ref,      # (F_IMG, 4H)  v_g-columns of w_ih layer0, transposed
                              whhblk_ref,    # (2H, 8H)     block-diag [[whh0^T,0],[0,whh1^T]]
                              wih1T_ref,     # (H, 4H)
                              out_ref,       # (B, SEQ*H)   lane-dense per-step outputs
                              state_ref):    # (B, 4H)      packed final state [h0|h1|c0|c1]
    vg = vg_ref[...]

    # ---- t == 0 state init: image_map = linear(v_g); h = c = image_map ------
    img = (jnp.dot(vg, wlinT_ref[...], preferred_element_type=jnp.float32)
           + blin_ref[...])                                    # (B, L*H) = [h0_init | h1_init]
    h0, h1 = img[:, 0 * H:1 * H], img[:, 1 * H:2 * H]
    c0, c1 = img[:, 0 * H:1 * H], img[:, 1 * H:2 * H]

    # ---- hoisted, time-invariant matmuls (off the recurrent critical path) ---
    # ReLU(Embedding) -> layer-0 xt gate contribution, all steps in one MXU pass.
    xg_all = jnp.dot(jnp.maximum(xt_ref[...], 0.0), wx0T_ref[...],
                     preferred_element_type=jnp.float32)        # (SEQ*B, 4H)
    # v_g gate contribution (identical every step).
    vgate = jnp.dot(vg, wv0T_ref[...],
                    preferred_element_type=jnp.float32)         # (B, 4H)

    # ---- gate tanh-lane mask built ONCE (compile-time constant) --------------
    lane = jax.lax.broadcasted_iota(jnp.int32, (B, G4), 1)
    g_mask = (lane >= 2 * H) & (lane < 3 * H)                   # g-slice of [i|f|g|o]

    def lstm_gates(gates, c_prev):
        # gates: (B, 4H) laid out [i | f | g | o]; one sigmoid + one tanh over the
        # full vreg, one select with the hoisted mask.
        sg = jax.nn.sigmoid(gates)
        th = jnp.tanh(gates)
        act = jnp.where(g_mask, th, sg)
        i = act[:, 0 * H:1 * H]
        f = act[:, 1 * H:2 * H]
        g = act[:, 2 * H:3 * H]
        o = act[:, 3 * H:4 * H]
        c_new = f * c_prev + i * g
        h_new = o * jnp.tanh(c_new)
        return h_new, c_new

    whh_blk = whhblk_ref[...]
    wih1T = wih1T_ref[...]

    # ---- recurrence: fully unrolled, state carried in vregs ------------------
    # (static Python loop == unrolled at trace time; gives static slice indices
    #  and equivalent codegen to lax.fori_loop(..., unroll=True) at SEQ=8)
    outs = []
    for s in range(SEQ):
        # one 256-lane MXU pass for BOTH hidden-state matmuls (uses h0_prev, h1_prev)
        hh = jnp.dot(jnp.concatenate([h0, h1], axis=1), whh_blk,
                     preferred_element_type=jnp.float32)        # (B, 8H)

        # layer 0: cat([xt, v_g]) @ w_ih0^T expressed as hoisted xg + vgate
        g0 = xg_all[s * B:(s + 1) * B, :] + vgate + hh[:, 0:G4]
        h0, c0 = lstm_gates(g0, c0)

        # layer 1 (inter-layer LSTM dropout is identity in eval mode)
        g1 = (jnp.dot(h0, wih1T, preferred_element_type=jnp.float32)
              + hh[:, G4:2 * G4])
        h1, c1 = lstm_gates(g1, c1)

        outs.append(h1)

    # ---- single lane-dense writebacks ----------------------------------------
    out_ref[...] = jnp.concatenate(outs, axis=1)                  # (B, SEQ*H)
    state_ref[...] = jnp.concatenate([h0, h1, c0, c1], axis=1)    # (B, 4H)


# -----------------------------------------------------------------------------
# Wrapper: runs AllImgCore.forward for time = 0 .. SEQ-1 with the state carried,
# in a single kernel launch.  Returns the per-step outputs stacked along dim 1
# (each step's output_.permute(1,0,2)) and the final PyTorch-layout (h, c) state.
# -----------------------------------------------------------------------------
def allimg_core_sequence(V, v_g, captions, emb_table, params):
    del V  # only used for batch_size in the PyTorch module

    # Embedding gather for the whole caption, done once in XLA glue (table is tiny).
    xt_all = jnp.transpose(emb_table[captions], (1, 0, 2)).reshape(SEQ * B, H)  # pre-ReLU

    # Pre-transposed weights so every MXU operand has 4H = 128 (or 256) on the lane axis.
    wlinT = params["w_lin"].T                                     # (F_IMG, L*H)
    wx0T  = params["w_ih0"][:, :H].T                              # (H, 4H)
    wv0T  = params["w_ih0"][:, H:].T                              # (F_IMG, 4H)
    whh0T = params["w_hh0"].T                                     # (H, 4H)
    whh1T = params["w_hh1"].T                                     # (H, 4H)
    wih1T = params["w_ih1"].T                                     # (H, 4H)

    # Block-diagonal packing so both hidden-state matmuls run as one 256-lane MXU pass.
    zpad = jnp.zeros((H, G4), jnp.float32)
    whh_blk = jnp.concatenate(
        [jnp.concatenate([whh0T, zpad], axis=1),
         jnp.concatenate([zpad, whh1T], axis=1)], axis=0)         # (2H, 8H)

    const2 = lambda i: (0, 0)
    grid_spec = pltpu.PrefetchScalarGridSpec(
        num_scalar_prefetch=0,
        grid=(1,),                                                # single invocation
        in_specs=[
            pl.BlockSpec((SEQ * B, H), const2),                   # xt for all steps (resident)
            pl.BlockSpec((B, F_IMG), const2),                     # v_g
            pl.BlockSpec((F_IMG, L * H), const2),                 # w_lin^T
            pl.BlockSpec((1, L * H), const2),                     # b_lin
            pl.BlockSpec((H, G4), const2),                        # wx0^T
            pl.BlockSpec((F_IMG, G4), const2),                    # wv0^T
            pl.BlockSpec((2 * H, 2 * G4), const2),                # block-diag whh^T
            pl.BlockSpec((H, G4), const2),                        # wih1^T
        ],
        out_specs=(
            pl.BlockSpec((B, SEQ * H), const2),                   # lane-dense output slab
            pl.BlockSpec((B, ST), const2),                        # packed final state
        ),
    )

    out_slab, packed = pl.pallas_call(
        _allimg_core_fused_kernel,
        out_shape=(jax.ShapeDtypeStruct((B, SEQ * H), jnp.float32),
                   jax.ShapeDtypeStruct((B, ST), jnp.float32)),
        grid_spec=grid_spec,
        compiler_params=pltpu.CompilerParams(
            dimension_semantics=("arbitrary",)),                  # serial recurrence, one TC
    )(xt_all, v_g, wlinT, params["b_lin"], wx0T, wv0T, whh_blk, wih1T)

    outputs = out_slab.reshape(B, SEQ, H)                         # (B, SEQ, H)
    h = packed[:, :L * H].reshape(B, L, H).transpose(1, 0, 2)     # (L, B, H)
    c = packed[:, L * H:].reshape(B, L, H).transpose(1, 0, 2)     # (L, B, H)
    return outputs, (h, c)


# -----------------------------------------------------------------------------
# Pure-JAX reference mirroring the PyTorch per-step forward, looped over SEQ.
# -----------------------------------------------------------------------------
def allimg_core_reference_step(time, v_g, captions, state, emb_table, params):
    it = captions[:, time]
    xt = jnp.maximum(emb_table[it], 0.0)
    h_in, c_in = state
    if time == 0:
        img = v_g @ params["w_lin"].T + params["b_lin"][0]
        img_map = img.reshape(B, L, H).transpose(1, 0, 2)
        h_in, c_in = img_map, img_map
    inp = jnp.concatenate([xt, v_g], axis=1)
    hs, cs = [], []
    for l in range(L):
        wih, whh = params[f"w_ih{l}"], params[f"w_hh{l}"]
        gates = inp @ wih.T + h_in[l] @ whh.T
        i = jax.nn.sigmoid(gates[:, :H])
        f = jax.nn.sigmoid(gates[:, H:2 * H])
        g = jnp.tanh(gates[:, 2 * H:3 * H])
        o = jax.nn.sigmoid(gates[:, 3 * H:])
        c_new = f * c_in[l] + i * g
        h_new = o * jnp.tanh(c_new)
        hs.append(h_new)
        cs.append(c_new)
        inp = h_new
    return h_new[:, None, :], (jnp.stack(hs), jnp.stack(cs))


def allimg_core_reference_sequence(v_g, captions, emb_table, params):
    state = (jnp.zeros((L, B, H), jnp.float32), jnp.zeros((L, B, H), jnp.float32))
    outs = []
    for time in range(SEQ):
        out, state = allimg_core_reference_step(time, v_g, captions, state,
                                                emb_table, params)
        outs.append(out)
    return jnp.concatenate(outs, axis=1), state


if __name__ == "__main__":
    key = jax.random.PRNGKey(0)
    ks = jax.random.split(key, 10)

    # deterministic "parameters" (synthetic, not a checkpoint)
    emb_table = 0.1 * jax.random.normal(ks[0], (VOCAB + 1, H), jnp.float32)
    params = {
        "w_lin": 0.1 * jax.random.normal(ks[1], (L * H, F_IMG), jnp.float32),
        "b_lin": 0.1 * jax.random.normal(ks[2], (1, L * H), jnp.float32),
        "w_ih0": 0.1 * jax.random.normal(ks[3], (4 * H, H + F_IMG), jnp.float32),
        "w_hh0": 0.1 * jax.random.normal(ks[4], (4 * H, H), jnp.float32),
        "w_ih1": 0.1 * jax.random.normal(ks[5], (4 * H, H), jnp.float32),
        "w_hh1": 0.1 * jax.random.normal(ks[6], (4 * H, H), jnp.float32),
    }

    # deterministic inputs
    V = jax.random.normal(ks[7], (B, NREG, F_IMG), jnp.float32)      # unused by forward
    v_g = jax.random.normal(ks[8], (B, F_IMG), jnp.float32)
    captions = jax.random.randint(ks[9], (B, SEQ), 0, VOCAB + 1, jnp.int32)

    outputs, (h, c) = jax.jit(allimg_core_sequence)(V, v_g, captions, emb_table, params)
    outputs = jax.block_until_ready(outputs)
    h = jax.block_until_ready(h)
    c = jax.block_until_ready(c)

    ref_out, (ref_h, ref_c) = allimg_core_reference_sequence(v_g, captions, emb_table, params)

    assert outputs.shape == (B, SEQ, H)
    assert h.shape == (L, B, H) and c.shape == (L, B, H)
    assert jnp.allclose(outputs, ref_out, atol=1e-4, rtol=1e-4)
    assert jnp.allclose(h, ref_h, atol=1e-4, rtol=1e-4)
    assert jnp.allclose(c, ref_c, atol=1e-4, rtol=1e-4)

    # TODO(synk): Dropout (embed + inter-layer LSTM dropout) is modeled as identity (eval mode);
    # training-mode stochastic dropout is not reproduced.
    print("KERNEL_OK")
</pallas_src>

<mosaic_0001>
module attributes {stable_mosaic.version = 11 : i64} {
  func.func @_allimg_core_fused_kernel(%arg0: i32, %arg1: memref<64x32xf32, #tpu.memory_space<vmem>>, %arg2: memref<8x64xf32, #tpu.memory_space<vmem>>, %arg3: memref<64x64xf32, #tpu.memory_space<vmem>>, %arg4: memref<1x64xf32, #tpu.memory_space<vmem>>, %arg5: memref<32x128xf32, #tpu.memory_space<vmem>>, %arg6: memref<64x128xf32, #tpu.memory_space<vmem>>, %arg7: memref<64x256xf32, #tpu.memory_space<vmem>>, %arg8: memref<32x128xf32, #tpu.memory_space<vmem>>, %arg9: memref<8x256xf32, #tpu.memory_space<vmem>>, %arg10: memref<8x128xf32, #tpu.memory_space<vmem>>) attributes {dimension_semantics = [#tpu.dimension_semantics<arbitrary>], iteration_bounds = array<i64: 1>, scalar_prefetch = 0 : i64, scratch_operands = 0 : i64, tpu.core_type = #tpu.core_type<tc>, window_params = [{pipeline_mode = #tpu.pipeline_mode<synchronous>, transform_indices = @transform_0, window_bounds = array<i64: 64, 32>}, {pipeline_mode = #tpu.pipeline_mode<synchronous>, transform_indices = @transform_1, window_bounds = array<i64: 8, 64>}, {pipeline_mode = #tpu.pipeline_mode<synchronous>, transform_indices = @transform_2, window_bounds = array<i64: 64, 64>}, {pipeline_mode = #tpu.pipeline_mode<synchronous>, transform_indices = @transform_3, window_bounds = array<i64: 1, 64>}, {pipeline_mode = #tpu.pipeline_mode<synchronous>, transform_indices = @transform_4, window_bounds = array<i64: 32, 128>}, {pipeline_mode = #tpu.pipeline_mode<synchronous>, transform_indices = @transform_5, window_bounds = array<i64: 64, 128>}, {pipeline_mode = #tpu.pipeline_mode<synchronous>, transform_indices = @transform_6, window_bounds = array<i64: 64, 256>}, {pipeline_mode = #tpu.pipeline_mode<synchronous>, transform_indices = @transform_7, window_bounds = array<i64: 32, 128>}, {pipeline_mode = #tpu.pipeline_mode<synchronous>, transform_indices = @transform_8, window_bounds = array<i64: 8, 256>}, {pipeline_mode = #tpu.pipeline_mode<synchronous>, transform_indices = @transform_9, window_bounds = array<i64: 8, 128>}]} {
    %c0 = arith.constant 0 : index
    %c0_0 = arith.constant 0 : index
    %0 = vector.load %arg2[%c0, %c0_0] : memref<8x64xf32, #tpu.memory_space<vmem>>, vector<8x64xf32>
    %c0_1 = arith.constant 0 : index
    %c0_2 = arith.constant 0 : index
    %1 = vector.load %arg3[%c0_1, %c0_2] : memref<64x64xf32, #tpu.memory_space<vmem>>, vector<64x64xf32>
    %cst = arith.constant dense<0.000000e+00> : vector<8x64xf32>
    %2 = tpu.matmul %0, %1, %cst {dimension_numbers = #tpu.dot_dimension_numbers<[1], [0], [0], [1], [0, 0, 1, 1], [], []>} : vector<8x64xf32>, vector<64x64xf32>, vector<8x64xf32> -> vector<8x64xf32>
    %c0_3 = arith.constant 0 : index
    %c0_4 = arith.constant 0 : index
    %3 = vector.load %arg4[%c0_3, %c0_4] : memref<1x64xf32, #tpu.memory_space<vmem>>, vector<1x64xf32>
    %4 = vector.broadcast %3 : vector<1x64xf32> to vector<8x64xf32>
    %5 = arith.addf %2, %4 : vector<8x64xf32>
    %6 = vector.extract_strided_slice %5 {offsets = [0, 0], sizes = [8, 32], strides = [1, 1]} : vector<8x64xf32> to vector<8x32xf32>
    %7 = vector.extract_strided_slice %5 {offsets = [0, 32], sizes = [8, 32], strides = [1, 1]} : vector<8x64xf32> to vector<8x32xf32>
    %8 = vector.extract_strided_slice %5 {offsets = [0, 0], sizes = [8, 32], strides = [1, 1]} : vector<8x64xf32> to vector<8x32xf32>
    %9 = vector.extract_strided_slice %5 {offsets = [0, 32], sizes = [8, 32], strides = [1, 1]} : vector<8x64xf32> to vector<8x32xf32>
    %c0_5 = arith.constant 0 : index
    %c0_6 = arith.constant 0 : index
    %10 = vector.load %arg1[%c0_5, %c0_6] : memref<64x32xf32, #tpu.memory_space<vmem>>, vector<64x32xf32>
    %cst_7 = arith.constant 0.000000e+00 : f32
    %11 = vector.broadcast %cst_7 : f32 to vector<64x32xf32>
    %12 = arith.maximumf %10, %11 : vector<64x32xf32>
    %c0_8 = arith.constant 0 : index
    %c0_9 = arith.constant 0 : index
    %13 = vector.load %arg5[%c0_8, %c0_9] : memref<32x128xf32, #tpu.memory_space<vmem>>, vector<32x128xf32>
    %cst_10 = arith.constant dense<0.000000e+00> : vector<64x128xf32>
    %14 = tpu.matmul %12, %13, %cst_10 {dimension_numbers = #tpu.dot_dimension_numbers<[1], [0], [0], [1], [0, 0, 1, 1], [], []>} : vector<64x32xf32>, vector<32x128xf32>, vector<64x128xf32> -> vector<64x128xf32>
    %c0_11 = arith.constant 0 : index
    %c0_12 = arith.constant 0 : index
    %15 = vector.load %arg6[%c0_11, %c0_12] : memref<64x128xf32, #tpu.memory_space<vmem>>, vector<64x128xf32>
    %cst_13 = arith.constant dense<0.000000e+00> : vector<8x128xf32>
    %16 = tpu.matmul %0, %15, %cst_13 {dimension_numbers = #tpu.dot_dimension_numbers<[1], [0], [0], [1], [0, 0, 1, 1], [], []>} : vector<8x64xf32>, vector<64x128xf32>, vector<8x128xf32> -> vector<8x128xf32>
    %17 = tpu.iota {dimensions = array<i32: 1>} : vector<8x128xi32>
    %c64_i32 = arith.constant 64 : i32
    %18 = vector.broadcast %c64_i32 : i32 to vector<8x128xi32>
    %19 = arith.cmpi sge, %17, %18 : vector<8x128xi32>
    %c96_i32 = arith.constant 96 : i32
    %20 = vector.broadcast %c96_i32 : i32 to vector<8x128xi32>
    %21 = arith.cmpi slt, %17, %20 : vector<8x128xi32>
    %22 = arith.andi %19, %21 : vector<8x128xi1>
    %c0_14 = arith.constant 0 : index
    %c0_15 = arith.constant 0 : index
    %23 = vector.load %arg7[%c0_14, %c0_15] : memref<64x256xf32, #tpu.memory_space<vmem>>, vector<64x256xf32>
    %c0_16 = arith.constant 0 : index
    %c0_17 = arith.constant 0 : index
    %24 = vector.load %arg8[%c0_16, %c0_17] : memref<32x128xf32, #tpu.memory_space<vmem>>, vector<32x128xf32>
    %25 = tpu.concatenate %6, %7 in 1 : vector<8x32xf32>, vector<8x32xf32> -> vector<8x64xf32>
    %cst_18 = arith.constant dense<0.000000e+00> : vector<8x256xf32>
    %26 = tpu.matmul %25, %23, %cst_18 {dimension_numbers = #tpu.dot_dimension_numbers<[1], [0], [0], [1], [0, 0, 1, 1], [], []>} : vector<8x64xf32>, vector<64x256xf32>, vector<8x256xf32> -> vector<8x256xf32>
    %27 = vector.extract_strided_slice %14 {offsets = [0, 0], sizes = [8, 128], strides = [1, 1]} : vector<64x128xf32> to vector<8x128xf32>
    %28 = arith.addf %27, %16 : vector<8x128xf32>
    %29 = vector.extract_strided_slice %26 {offsets = [0, 0], sizes = [8, 128], strides = [1, 1]} : vector<8x256xf32> to vector<8x128xf32>
    %30 = arith.addf %28, %29 : vector<8x128xf32>
    %31 = arith.negf %30 : vector<8x128xf32>
    %32 = math.exp %31 : vector<8x128xf32>
    %cst_19 = arith.constant 1.000000e+00 : f32
    %33 = vector.broadcast %cst_19 : f32 to vector<8x128xf32>
    %34 = arith.addf %33, %32 : vector<8x128xf32>
    %35 = arith.divf %33, %34 : vector<8x128xf32>
    %36 = math.tanh %30 : vector<8x128xf32>
    %37 = arith.select %22, %36, %35 : vector<8x128xi1>, vector<8x128xf32>
    %38 = vector.extract_strided_slice %37 {offsets = [0, 0], sizes = [8, 32], strides = [1, 1]} : vector<8x128xf32> to vector<8x32xf32>
    %39 = vector.extract_strided_slice %37 {offsets = [0, 32], sizes = [8, 32], strides = [1, 1]} : vector<8x128xf32> to vector<8x32xf32>
    %40 = vector.extract_strided_slice %37 {offsets = [0, 64], sizes = [8, 32], strides = [1, 1]} : vector<8x128xf32> to vector<8x32xf32>
    %41 = vector.extract_strided_slice %37 {offsets = [0, 96], sizes = [8, 32], strides = [1, 1]} : vector<8x128xf32> to vector<8x32xf32>
    %42 = arith.mulf %39, %8 : vector<8x32xf32>
    %43 = arith.mulf %38, %40 : vector<8x32xf32>
    %44 = arith.addf %42, %43 : vector<8x32xf32>
    %45 = math.tanh %44 : vector<8x32xf32>
    %46 = arith.mulf %41, %45 : vector<8x32xf32>
    %cst_20 = arith.constant dense<0.000000e+00> : vector<8x128xf32>
    %47 = tpu.matmul %46, %24, %cst_20 {dimension_numbers = #tpu.dot_dimension_numbers<[1], [0], [0], [1], [0, 0, 1, 1], [], []>} : vector<8x32xf32>, vector<32x128xf32>, vector<8x128xf32> -> vector<8x128xf32>
    %48 = vector.extract_strided_slice %26 {offsets = [0, 128], sizes = [8, 128], strides = [1, 1]} : vector<8x256xf32> to vector<8x128xf32>
    %49 = arith.addf %47, %48 : vector<8x128xf32>
    %50 = arith.negf %49 : vector<8x128xf32>
    %51 = math.exp %50 : vector<8x128xf32>
    %cst_21 = arith.constant 1.000000e+00 : f32
    %52 = vector.broadcast %cst_21 : f32 to vector<8x128xf32>
    %53 = arith.addf %52, %51 : vector<8x128xf32>
    %54 = arith.divf %52, %53 : vector<8x128xf32>
    %55 = math.tanh %49 : vector<8x128xf32>
    %56 = arith.select %22, %55, %54 : vector<8x128xi1>, vector<8x128xf32>
    %57 = vector.extract_strided_slice %56 {offsets = [0, 0], sizes = [8, 32], strides = [1, 1]} : vector<8x128xf32> to vector<8x32xf32>
    %58 = vector.extract_strided_slice %56 {offsets = [0, 32], sizes = [8, 32], strides = [1, 1]} : vector<8x128xf32> to vector<8x32xf32>
    %59 = vector.extract_strided_slice %56 {offsets = [0, 64], sizes = [8, 32], strides = [1, 1]} : vector<8x128xf32> to vector<8x32xf32>
    %60 = vector.extract_strided_slice %56 {offsets = [0, 96], sizes = [8, 32], strides = [1, 1]} : vector<8x128xf32> to vector<8x32xf32>
    %61 = arith.mulf %58, %9 : vector<8x32xf32>
    %62 = arith.mulf %57, %59 : vector<8x32xf32>
    %63 = arith.addf %61, %62 : vector<8x32xf32>
    %64 = math.tanh %63 : vector<8x32xf32>
    %65 = arith.mulf %60, %64 : vector<8x32xf32>
    %66 = tpu.concatenate %46, %65 in 1 : vector<8x32xf32>, vector<8x32xf32> -> vector<8x64xf32>
    %cst_22 = arith.constant dense<0.000000e+00> : vector<8x256xf32>
    %67 = tpu.matmul %66, %23, %cst_22 {dimension_numbers = #tpu.dot_dimension_numbers<[1], [0], [0], [1], [0, 0, 1, 1], [], []>} : vector<8x64xf32>, vector<64x256xf32>, vector<8x256xf32> -> vector<8x256xf32>
    %68 = vector.extract_strided_slice %14 {offsets = [8, 0], sizes = [8, 128], strides = [1, 1]} : vector<64x128xf32> to vector<8x128xf32>
    %69 = arith.addf %68, %16 : vector<8x128xf32>
    %70 = vector.extract_strided_slice %67 {offsets = [0, 0], sizes = [8, 128], strides = [1, 1]} : vector<8x256xf32> to vector<8x128xf32>
    %71 = arith.addf %69, %70 : vector<8x128xf32>
    %72 = arith.negf %71 : vector<8x128xf32>
    %73 = math.exp %72 : vector<8x128xf32>
    %cst_23 = arith.constant 1.000000e+00 : f32
    %74 = vector.broadcast %cst_23 : f32 to vector<8x128xf32>
    %75 = arith.addf %74, %73 : vector<8x128xf32>
    %76 = arith.divf %74, %75 : vector<8x128xf32>
    %77 = math.tanh %71 : vector<8x128xf32>
    %78 = arith.select %22, %77, %76 : vector<8x128xi1>, vector<8x128xf32>
    %79 = vector.extract_strided_slice %78 {offsets = [0, 0], sizes = [8, 32], strides = [1, 1]} : vector<8x128xf32> to vector<8x32xf32>
    %80 = vector.extract_strided_slice %78 {offsets = [0, 32], sizes = [8, 32], strides = [1, 1]} : vector<8x128xf32> to vector<8x32xf32>
    %81 = vector.extract_strided_slice %78 {offsets = [0, 64], sizes = [8, 32], strides = [1, 1]} : vector<8x128xf32> to vector<8x32xf32>
    %82 = vector.extract_strided_slice %78 {offsets = [0, 96], sizes = [8, 32], strides = [1, 1]} : vector<8x128xf32> to vector<8x32xf32>
    %83 = arith.mulf %80, %44 : vector<8x32xf32>
    %84 = arith.mulf %79, %81 : vector<8x32xf32>
    %85 = arith.addf %83, %84 : vector<8x32xf32>
    %86 = math.tanh %85 : vector<8x32xf32>
    %87 = arith.mulf %82, %86 : vector<8x32xf32>
    %cst_24 = arith.constant dense<0.000000e+00> : vector<8x128xf32>
    %88 = tpu.matmul %87, %24, %cst_24 {dimension_numbers = #tpu.dot_dimension_numbers<[1], [0], [0], [1], [0, 0, 1, 1], [], []>} : vector<8x32xf32>, vector<32x128xf32>, vector<8x128xf32> -> vector<8x128xf32>
    %89 = vector.extract_strided_slice %67 {offsets = [0, 128], sizes = [8, 128], strides = [1, 1]} : vector<8x256xf32> to vector<8x128xf32>
    %90 = arith.addf %88, %89 : vector<8x128xf32>
    %91 = arith.negf %90 : vector<8x128xf32>
    %92 = math.exp %91 : vector<8x128xf32>
    %cst_25 = arith.constant 1.000000e+00 : f32
    %93 = vector.broadcast %cst_25 : f32 to vector<8x128xf32>
    %94 = arith.addf %93, %92 : vector<8x128xf32>
    %95 = arith.divf %93, %94 : vector<8x128xf32>
    %96 = math.tanh %90 : vector<8x128xf32>
    %97 = arith.select %22, %96, %95 : vector<8x128xi1>, vector<8x128xf32>
    %98 = vector.extract_strided_slice %97 {offsets = [0, 0], sizes = [8, 32], strides = [1, 1]} : vector<8x128xf32> to vector<8x32xf32>
    %99 = vector.extract_strided_slice %97 {offsets = [0, 32], sizes = [8, 32], strides = [1, 1]} : vector<8x128xf32> to vector<8x32xf32>
    %100 = vector.extract_strided_slice %97 {offsets = [0, 64], sizes = [8, 32], strides = [1, 1]} : vector<8x128xf32> to vector<8x32xf32>
    %101 = vector.extract_strided_slice %97 {offsets = [0, 96], sizes = [8, 32], strides = [1, 1]} : vector<8x128xf32> to vector<8x32xf32>
    %102 = arith.mulf %99, %63 : vector<8x32xf32>
    %103 = arith.mulf %98, %100 : vector<8x32xf32>
    %104 = arith.addf %102, %103 : vector<8x32xf32>
    %105 = math.tanh %104 : vector<8x32xf32>
    %106 = arith.mulf %101, %105 : vector<8x32xf32>
    %107 = tpu.concatenate %87, %106 in 1 : vector<8x32xf32>, vector<8x32xf32> -> vector<8x64xf32>
    %cst_26 = arith.constant dense<0.000000e+00> : vector<8x256xf32>
    %108 = tpu.matmul %107, %23, %cst_26 {dimension_numbers = #tpu.dot_dimension_numbers<[1], [0], [0], [1], [0, 0, 1, 1], [], []>} : vector<8x64xf32>, vector<64x256xf32>, vector<8x256xf32> -> vector<8x256xf32>
    %109 = vector.extract_strided_slice %14 {offsets = [16, 0], sizes = [8, 128], strides = [1, 1]} : vector<64x128xf32> to vector<8x128xf32>
    %110 = arith.addf %109, %16 : vector<8x128xf32>
    %111 = vector.extract_strided_slice %108 {offsets = [0, 0], sizes = [8, 128], strides = [1, 1]} : vector<8x256xf32> to vector<8x128xf32>
    %112 = arith.addf %110, %111 : vector<8x128xf32>
    %113 = arith.negf %112 : vector<8x128xf32>
    %114 = math.exp %113 : vector<8x128xf32>
    %cst_27 = arith.constant 1.000000e+00 : f32
    %115 = vector.broadcast %cst_27 : f32 to vector<8x128xf32>
    %116 = arith.addf %115, %114 : vector<8x128xf32>
    %117 = arith.divf %115, %116 : vector<8x128xf32>
    %118 = math.tanh %112 : vector<8x128xf32>
    %119 = arith.select %22, %118, %117 : vector<8x128xi1>, vector<8x128xf32>
    %120 = vector.extract_strided_slice %119 {offsets = [0, 0], sizes = [8, 32], strides = [1, 1]} : vector<8x128xf32> to vector<8x32xf32>
    %121 = vector.extract_strided_slice %119 {offsets = [0, 32], sizes = [8, 32], strides = [1, 1]} : vector<8x128xf32> to vector<8x32xf32>
    %122 = vector.extract_strided_slice %119 {offsets = [0, 64], sizes = [8, 32], strides = [1, 1]} : vector<8x128xf32> to vector<8x32xf32>
    %123 = vector.extract_strided_slice %119 {offsets = [0, 96], sizes = [8, 32], strides = [1, 1]} : vector<8x128xf32> to vector<8x32xf32>
    %124 = arith.mulf %121, %85 : vector<8x32xf32>
    %125 = arith.mulf %120, %122 : vector<8x32xf32>
    %126 = arith.addf %124, %125 : vector<8x32xf32>
    %127 = math.tanh %126 : vector<8x32xf32>
    %128 = arith.mulf %123, %127 : vector<8x32xf32>
    %cst_28 = arith.constant dense<0.000000e+00> : vector<8x128xf32>
    %129 = tpu.matmul %128, %24, %cst_28 {dimension_numbers = #tpu.dot_dimension_numbers<[1], [0], [0], [1], [0, 0, 1, 1], [], []>} : vector<8x32xf32>, vector<32x128xf32>, vector<8x128xf32> -> vector<8x128xf32>
    %130 = vector.extract_strided_slice %108 {offsets = [0, 128], sizes = [8, 128], strides = [1, 1]} : vector<8x256xf32> to vector<8x128xf32>
    %131 = arith.addf %129, %130 : vector<8x128xf32>
    %132 = arith.negf %131 : vector<8x128xf32>
    %133 = math.exp %132 : vector<8x128xf32>
    %cst_29 = arith.constant 1.000000e+00 : f32
    %134 = vector.broadcast %cst_29 : f32 to vector<8x128xf32>
    %135 = arith.addf %134, %133 : vector<8x128xf32>
    %136 = arith.divf %134, %135 : vector<8x128xf32>
    %137 = math.tanh %131 : vector<8x128xf32>
    %138 = arith.select %22, %137, %136 : vector<8x128xi1>, vector<8x128xf32>
    %139 = vector.extract_strided_slice %138 {offsets = [0, 0], sizes = [8, 32], strides = [1, 1]} : vector<8x128xf32> to vector<8x32xf32>
    %140 = vector.extract_strided_slice %138 {offsets = [0, 32], sizes = [8, 32], strides = [1, 1]} : vector<8x128xf32> to vector<8x32xf32>
    %141 = vector.extract_strided_slice %138 {offsets = [0, 64], sizes = [8, 32], strides = [1, 1]} : vector<8x128xf32> to vector<8x32xf32>
    %142 = vector.extract_strided_slice %138 {offsets = [0, 96], sizes = [8, 32], strides = [1, 1]} : vector<8x128xf32> to vector<8x32xf32>
    %143 = arith.mulf %140, %104 : vector<8x32xf32>
    %144 = arith.mulf %139, %141 : vector<8x32xf32>
    %145 = arith.addf %143, %144 : vector<8x32xf32>
    %146 = math.tanh %145 : vector<8x32xf32>
    %147 = arith.mulf %142, %146 : vector<8x32xf32>
    %148 = tpu.concatenate %128, %147 in 1 : vector<8x32xf32>, vector<8x32xf32> -> vector<8x64xf32>
    %cst_30 = arith.constant dense<0.000000e+00> : vector<8x256xf32>
    %149 = tpu.matmul %148, %23, %cst_30 {dimension_numbers = #tpu.dot_dimension_numbers<[1], [0], [0], [1], [0, 0, 1, 1], [], []>} : vector<8x64xf32>, vector<64x256xf32>, vector<8x256xf32> -> vector<8x256xf32>
    %150 = vector.extract_strided_slice %14 {offsets = [24, 0], sizes = [8, 128], strides = [1, 1]} : vector<64x128xf32> to vector<8x128xf32>
    %151 = arith.addf %150, %16 : vector<8x128xf32>
    %152 = vector.extract_strided_slice %149 {offsets = [0, 0], sizes = [8, 128], strides = [1, 1]} : vector<8x256xf32> to vector<8x128xf32>
    %153 = arith.addf %151, %152 : vector<8x128xf32>
    %154 = arith.negf %153 : vector<8x128xf32>
    %155 = math.exp %154 : vector<8x128xf32>
    %cst_31 = arith.constant 1.000000e+00 : f32
    %156 = vector.broadcast %cst_31 : f32 to vector<8x128xf32>
    %157 = arith.addf %156, %155 : vector<8x128xf32>
    %158 = arith.divf %156, %157 : vector<8x128xf32>
    %159 = math.tanh %153 : vector<8x128xf32>
    %160 = arith.select %22, %159, %158 : vector<8x128xi1>, vector<8x128xf32>
    %161 = vector.extract_strided_slice %160 {offsets = [0, 0], sizes = [8, 32], strides = [1, 1]} : vector<8x128xf32> to vector<8x32xf32>
    %162 = vector.extract_strided_slice %160 {offsets = [0, 32], sizes = [8, 32], strides = [1, 1]} : vector<8x128xf32> to vector<8x32xf32>
    %163 = vector.extract_strided_slice %160 {offsets = [0, 64], sizes = [8, 32], strides = [1, 1]} : vector<8x128xf32> to vector<8x32xf32>
    %164 = vector.extract_strided_slice %160 {offsets = [0, 96], sizes = [8, 32], strides = [1, 1]} : vector<8x128xf32> to vector<8x32xf32>
    %165 = arith.mulf %162, %126 : vector<8x32xf32>
    %166 = arith.mulf %161, %163 : vector<8x32xf32>
    %167 = arith.addf %165, %166 : vector<8x32xf32>
    %168 = math.tanh %167 : vector<8x32xf32>
    %169 = arith.mulf %164, %168 : vector<8x32xf32>
    %cst_32 = arith.constant dense<0.000000e+00> : vector<8x128xf32>
    %170 = tpu.matmul %169, %24, %cst_32 {dimension_numbers = #tpu.dot_dimension_numbers<[1], [0], [0], [1], [0, 0, 1, 1], [], []>} : vector<8x32xf32>, vector<32x128xf32>, vector<8x128xf32> -> vector<8x128xf32>
    %171 = vector.extract_strided_slice %149 {offsets = [0, 128], sizes = [8, 128], strides = [1, 1]} : vector<8x256xf32> to vector<8x128xf32>
    %172 = arith.addf %170, %171 : vector<8x128xf32>
    %173 = arith.negf %172 : vector<8x128xf32>
    %174 = math.exp %173 : vector<8x128xf32>
    %cst_33 = arith.constant 1.000000e+00 : f32
    %175 = vector.broadcast %cst_33 : f32 to vector<8x128xf32>
    %176 = arith.addf %175, %174 : vector<8x128xf32>
    %177 = arith.divf %175, %176 : vector<8x128xf32>
    %178 = math.tanh %172 : vector<8x128xf32>
    %179 = arith.select %22, %178, %177 : vector<8x128xi1>, vector<8x128xf32>
    %180 = vector.extract_strided_slice %179 {offsets = [0, 0], sizes = [8, 32], strides = [1, 1]} : vector<8x128xf32> to vector<8x32xf32>
    %181 = vector.extract_strided_slice %179 {offsets = [0, 32], sizes = [8, 32], strides = [1, 1]} : vector<8x128xf32> to vector<8x32xf32>
    %182 = vector.extract_strided_slice %179 {offsets = [0, 64], sizes = [8, 32], strides = [1, 1]} : vector<8x128xf32> to vector<8x32xf32>
    %183 = vector.extract_strided_slice %179 {offsets = [0, 96], sizes = [8, 32], strides = [1, 1]} : vector<8x128xf32> to vector<8x32xf32>
    %184 = arith.mulf %181, %145 : vector<8x32xf32>
    %185 = arith.mulf %180, %182 : vector<8x32xf32>
    %186 = arith.addf %184, %185 : vector<8x32xf32>
    %187 = math.tanh %186 : vector<8x32xf32>
    %188 = arith.mulf %183, %187 : vector<8x32xf32>
    %189 = tpu.concatenate %169, %188 in 1 : vector<8x32xf32>, vector<8x32xf32> -> vector<8x64xf32>
    %cst_34 = arith.constant dense<0.000000e+00> : vector<8x256xf32>
    %190 = tpu.matmul %189, %23, %cst_34 {dimension_numbers = #tpu.dot_dimension_numbers<[1], [0], [0], [1], [0, 0, 1, 1], [], []>} : vector<8x64xf32>, vector<64x256xf32>, vector<8x256xf32> -> vector<8x256xf32>
    %191 = vector.extract_strided_slice %14 {offsets = [32, 0], sizes = [8, 128], strides = [1, 1]} : vector<64x128xf32> to vector<8x128xf32>
    %192 = arith.addf %191, %16 : vector<8x128xf32>
    %193 = vector.extract_strided_slice %190 {offsets = [0, 0], sizes = [8, 128], strides = [1, 1]} : vector<8x256xf32> to vector<8x128xf32>
    %194 = arith.addf %192, %193 : vector<8x128xf32>
    %195 = arith.negf %194 : vector<8x128xf32>
    %196 = math.exp %195 : vector<8x128xf32>
    %cst_35 = arith.constant 1.000000e+00 : f32
    %197 = vector.broadcast %cst_35 : f32 to vector<8x128xf32>
    %198 = arith.addf %197, %196 : vector<8x128xf32>
    %199 = arith.divf %197, %198 : vector<8x128xf32>
    %200 = math.tanh %194 : vector<8x128xf32>
    %201 = arith.select %22, %200, %199 : vector<8x128xi1>, vector<8x128xf32>
    %202 = vector.extract_strided_slice %201 {offsets = [0, 0], sizes = [8, 32], strides = [1, 1]} : vector<8x128xf32> to vector<8x32xf32>
    %203 = vector.extract_strided_slice %201 {offsets = [0, 32], sizes = [8, 32], strides = [1, 1]} : vector<8x128xf32> to vector<8x32xf32>
    %204 = vector.extract_strided_slice %201 {offsets = [0, 64], sizes = [8, 32], strides = [1, 1]} : vector<8x128xf32> to vector<8x32xf32>
    %205 = vector.extract_strided_slice %201 {offsets = [0, 96], sizes = [8, 32], strides = [1, 1]} : vector<8x128xf32> to vector<8x32xf32>
    %206 = arith.mulf %203, %167 : vector<8x32xf32>
    %207 = arith.mulf %202, %204 : vector<8x32xf32>
    %208 = arith.addf %206, %207 : vector<8x32xf32>
    %209 = math.tanh %208 : vector<8x32xf32>
    %210 = arith.mulf %205, %209 : vector<8x32xf32>
    %cst_36 = arith.constant dense<0.000000e+00> : vector<8x128xf32>
    %211 = tpu.matmul %210, %24, %cst_36 {dimension_numbers = #tpu.dot_dimension_numbers<[1], [0], [0], [1], [0, 0, 1, 1], [], []>} : vector<8x32xf32>, vector<32x128xf32>, vector<8x128xf32> -> vector<8x128xf32>
    %212 = vector.extract_strided_slice %190 {offsets = [0, 128], sizes = [8, 128], strides = [1, 1]} : vector<8x256xf32> to vector<8x128xf32>
    %213 = arith.addf %211, %212 : vector<8x128xf32>
    %214 = arith.negf %213 : vector<8x128xf32>
    %215 = math.exp %214 : vector<8x128xf32>
    %cst_37 = arith.constant 1.000000e+00 : f32
    %216 = vector.broadcast %cst_37 : f32 to vector<8x128xf32>
    %217 = arith.addf %216, %215 : vector<8x128xf32>
    %218 = arith.divf %216, %217 : vector<8x128xf32>
    %219 = math.tanh %213 : vector<8x128xf32>
    %220 = arith.select %22, %219, %218 : vector<8x128xi1>, vector<8x128xf32>
    %221 = vector.extract_strided_slice %220 {offsets = [0, 0], sizes = [8, 32], strides = [1, 1]} : vector<8x128xf32> to vector<8x32xf32>
    %222 = vector.extract_strided_slice %220 {offsets = [0, 32], sizes = [8, 32], strides = [1, 1]} : vector<8x128xf32> to vector<8x32xf32>
    %223 = vector.extract_strided_slice %220 {offsets = [0, 64], sizes = [8, 32], strides = [1, 1]} : vector<8x128xf32> to vector<8x32xf32>
    %224 = vector.extract_strided_slice %220 {offsets = [0, 96], sizes = [8, 32], strides = [1, 1]} : vector<8x128xf32> to vector<8x32xf32>
    %225 = arith.mulf %222, %186 : vector<8x32xf32>
    %226 = arith.mulf %221, %223 : vector<8x32xf32>
    %227 = arith.addf %225, %226 : vector<8x32xf32>
    %228 = math.tanh %227 : vector<8x32xf32>
    %229 = arith.mulf %224, %228 : vector<8x32xf32>
    %230 = tpu.concatenate %210, %229 in 1 : vector<8x32xf32>, vector<8x32xf32> -> vector<8x64xf32>
    %cst_38 = arith.constant dense<0.000000e+00> : vector<8x256xf32>
    %231 = tpu.matmul %230, %23, %cst_38 {dimension_numbers = #tpu.dot_dimension_numbers<[1], [0], [0], [1], [0, 0, 1, 1], [], []>} : vector<8x64xf32>, vector<64x256xf32>, vector<8x256xf32> -> vector<8x256xf32>
    %232 = vector.extract_strided_slice %14 {offsets = [40, 0], sizes = [8, 128], strides = [1, 1]} : vector<64x128xf32> to vector<8x128xf32>
    %233 = arith.addf %232, %16 : vector<8x128xf32>
    %234 = vector.extract_strided_slice %231 {offsets = [0, 0], sizes = [8, 128], strides = [1, 1]} : vector<8x256xf32> to vector<8x128xf32>
    %235 = arith.addf %233, %234 : vector<8x128xf32>
    %236 = arith.negf %235 : vector<8x128xf32>
    %237 = math.exp %236 : vector<8x128xf32>
    %cst_39 = arith.constant 1.000000e+00 : f32
    %238 = vector.broadcast %cst_39 : f32 to vector<8x128xf32>
    %239 = arith.addf %238, %237 : vector<8x128xf32>
    %240 = arith.divf %238, %239 : vector<8x128xf32>
    %241 = math.tanh %235 : vector<8x128xf32>
    %242 = arith.select %22, %241, %240 : vector<8x128xi1>, vector<8x128xf32>
    %243 = vector.extract_strided_slice %242 {offsets = [0, 0], sizes = [8, 32], strides = [1, 1]} : vector<8x128xf32> to vector<8x32xf32>
    %244 = vector.extract_strided_slice %242 {offsets = [0, 32], sizes = [8, 32], strides = [1, 1]} : vector<8x128xf32> to vector<8x32xf32>
    %245 = vector.extract_strided_slice %242 {offsets = [0, 64], sizes = [8, 32], strides = [1, 1]} : vector<8x128xf32> to vector<8x32xf32>
    %246 = vector.extract_strided_slice %242 {offsets = [0, 96], sizes = [8, 32], strides = [1, 1]} : vector<8x128xf32> to vector<8x32xf32>
    %247 = arith.mulf %244, %208 : vector<8x32xf32>
    %248 = arith.mulf %243, %245 : vector<8x32xf32>
    %249 = arith.addf %247, %248 : vector<8x32xf32>
    %250 = math.tanh %249 : vector<8x32xf32>
    %251 = arith.mulf %246, %250 : vector<8x32xf32>
    %cst_40 = arith.constant dense<0.000000e+00> : vector<8x128xf32>
    %252 = tpu.matmul %251, %24, %cst_40 {dimension_numbers = #tpu.dot_dimension_numbers<[1], [0], [0], [1], [0, 0, 1, 1], [], []>} : vector<8x32xf32>, vector<32x128xf32>, vector<8x128xf32> -> vector<8x128xf32>
    %253 = vector.extract_strided_slice %231 {offsets = [0, 128], sizes = [8, 128], strides = [1, 1]} : vector<8x256xf32> to vector<8x128xf32>
    %254 = arith.addf %252, %253 : vector<8x128xf32>
    %255 = arith.negf %254 : vector<8x128xf32>
    %256 = math.exp %255 : vector<8x128xf32>
    %cst_41 = arith.constant 1.000000e+00 : f32
    %257 = vector.broadcast %cst_41 : f32 to vector<8x128xf32>
    %258 = arith.addf %257, %256 : vector<8x128xf32>
    %259 = arith.divf %257, %258 : vector<8x128xf32>
    %260 = math.tanh %254 : vector<8x128xf32>
    %261 = arith.select %22, %260, %259 : vector<8x128xi1>, vector<8x128xf32>
    %262 = vector.extract_strided_slice %261 {offsets = [0, 0], sizes = [8, 32], strides = [1, 1]} : vector<8x128xf32> to vector<8x32xf32>
    %263 = vector.extract_strided_slice %261 {offsets = [0, 32], sizes = [8, 32], strides = [1, 1]} : vector<8x128xf32> to vector<8x32xf32>
    %264 = vector.extract_strided_slice %261 {offsets = [0, 64], sizes = [8, 32], strides = [1, 1]} : vector<8x128xf32> to vector<8x32xf32>
    %265 = vector.extract_strided_slice %261 {offsets = [0, 96], sizes = [8, 32], strides = [1, 1]} : vector<8x128xf32> to vector<8x32xf32>
    %266 = arith.mulf %263, %227 : vector<8x32xf32>
    %267 = arith.mulf %262, %264 : vector<8x32xf32>
    %268 = arith.addf %266, %267 : vector<8x32xf32>
    %269 = math.tanh %268 : vector<8x32xf32>
    %270 = arith.mulf %265, %269 : vector<8x32xf32>
    %271 = tpu.concatenate %251, %270 in 1 : vector<8x32xf32>, vector<8x32xf32> -> vector<8x64xf32>
    %cst_42 = arith.constant dense<0.000000e+00> : vector<8x256xf32>
    %272 = tpu.matmul %271, %23, %cst_42 {dimension_numbers = #tpu.dot_dimension_numbers<[1], [0], [0], [1], [0, 0, 1, 1], [], []>} : vector<8x64xf32>, vector<64x256xf32>, vector<8x256xf32> -> vector<8x256xf32>
    %273 = vector.extract_strided_slice %14 {offsets = [48, 0], sizes = [8, 128], strides = [1, 1]} : vector<64x128xf32> to vector<8x128xf32>
    %274 = arith.addf %273, %16 : vector<8x128xf32>
    %275 = vector.extract_strided_slice %272 {offsets = [0, 0], sizes = [8, 128], strides = [1, 1]} : vector<8x256xf32> to vector<8x128xf32>
    %276 = arith.addf %274, %275 : vector<8x128xf32>
    %277 = arith.negf %276 : vector<8x128xf32>
    %278 = math.exp %277 : vector<8x128xf32>
    %cst_43 = arith.constant 1.000000e+00 : f32
    %279 = vector.broadcast %cst_43 : f32 to vector<8x128xf32>
    %280 = arith.addf %279, %278 : vector<8x128xf32>
    %281 = arith.divf %279, %280 : vector<8x128xf32>
    %282 = math.tanh %276 : vector<8x128xf32>
    %283 = arith.select %22, %282, %281 : vector<8x128xi1>, vector<8x128xf32>
    %284 = vector.extract_strided_slice %283 {offsets = [0, 0], sizes = [8, 32], strides = [1, 1]} : vector<8x128xf32> to vector<8x32xf32>
    %285 = vector.extract_strided_slice %283 {offsets = [0, 32], sizes = [8, 32], strides = [1, 1]} : vector<8x128xf32> to vector<8x32xf32>
    %286 = vector.extract_strided_slice %283 {offsets = [0, 64], sizes = [8, 32], strides = [1, 1]} : vector<8x128xf32> to vector<8x32xf32>
    %287 = vector.extract_strided_slice %283 {offsets = [0, 96], sizes = [8, 32], strides = [1, 1]} : vector<8x128xf32> to vector<8x32xf32>
    %288 = arith.mulf %285, %249 : vector<8x32xf32>
    %289 = arith.mulf %284, %286 : vector<8x32xf32>
    %290 = arith.addf %288, %289 : vector<8x32xf32>
    %291 = math.tanh %290 : vector<8x32xf32>
    %292 = arith.mulf %287, %291 : vector<8x32xf32>
    %cst_44 = arith.constant dense<0.000000e+00> : vector<8x128xf32>
    %293 = tpu.matmul %292, %24, %cst_44 {dimension_numbers = #tpu.dot_dimension_numbers<[1], [0], [0], [1], [0, 0, 1, 1], [], []>} : vector<8x32xf32>, vector<32x128xf32>, vector<8x128xf32> -> vector<8x128xf32>
    %294 = vector.extract_strided_slice %272 {offsets = [0, 128], sizes = [8, 128], strides = [1, 1]} : vector<8x256xf32> to vector<8x128xf32>
    %295 = arith.addf %293, %294 : vector<8x128xf32>
    %296 = arith.negf %295 : vector<8x128xf32>
    %297 = math.exp %296 : vector<8x128xf32>
    %cst_45 = arith.constant 1.000000e+00 : f32
    %298 = vector.broadcast %cst_45 : f32 to vector<8x128xf32>
    %299 = arith.addf %298, %297 : vector<8x128xf32>
    %300 = arith.divf %298, %299 : vector<8x128xf32>
    %301 = math.tanh %295 : vector<8x128xf32>
    %302 = arith.select %22, %301, %300 : vector<8x128xi1>, vector<8x128xf32>
    %303 = vector.extract_strided_slice %302 {offsets = [0, 0], sizes = [8, 32], strides = [1, 1]} : vector<8x128xf32> to vector<8x32xf32>
    %304 = vector.extract_strided_slice %302 {offsets = [0, 32], sizes = [8, 32], strides = [1, 1]} : vector<8x128xf32> to vector<8x32xf32>
    %305 = vector.extract_strided_slice %302 {offsets = [0, 64], sizes = [8, 32], strides = [1, 1]} : vector<8x128xf32> to vector<8x32xf32>
    %306 = vector.extract_strided_slice %302 {offsets = [0, 96], sizes = [8, 32], strides = [1, 1]} : vector<8x128xf32> to vector<8x32xf32>
    %307 = arith.mulf %304, %268 : vector<8x32xf32>
    %308 = arith.mulf %303, %305 : vector<8x32xf32>
    %309 = arith.addf %307, %308 : vector<8x32xf32>
    %310 = math.tanh %309 : vector<8x32xf32>
    %311 = arith.mulf %306, %310 : vector<8x32xf32>
    %312 = tpu.concatenate %292, %311 in 1 : vector<8x32xf32>, vector<8x32xf32> -> vector<8x64xf32>
    %cst_46 = arith.constant dense<0.000000e+00> : vector<8x256xf32>
    %313 = tpu.matmul %312, %23, %cst_46 {dimension_numbers = #tpu.dot_dimension_numbers<[1], [0], [0], [1], [0, 0, 1, 1], [], []>} : vector<8x64xf32>, vector<64x256xf32>, vector<8x256xf32> -> vector<8x256xf32>
    %314 = vector.extract_strided_slice %14 {offsets = [56, 0], sizes = [8, 128], strides = [1, 1]} : vector<64x128xf32> to vector<8x128xf32>
    %315 = arith.addf %314, %16 : vector<8x128xf32>
    %316 = vector.extract_strided_slice %313 {offsets = [0, 0], sizes = [8, 128], strides = [1, 1]} : vector<8x256xf32> to vector<8x128xf32>
    %317 = arith.addf %315, %316 : vector<8x128xf32>
    %318 = arith.negf %317 : vector<8x128xf32>
    %319 = math.exp %318 : vector<8x128xf32>
    %cst_47 = arith.constant 1.000000e+00 : f32
    %320 = vector.broadcast %cst_47 : f32 to vector<8x128xf32>
    %321 = arith.addf %320, %319 : vector<8x128xf32>
    %322 = arith.divf %320, %321 : vector<8x128xf32>
    %323 = math.tanh %317 : vector<8x128xf32>
    %324 = arith.select %22, %323, %322 : vector<8x128xi1>, vector<8x128xf32>
    %325 = vector.extract_strided_slice %324 {offsets = [0, 0], sizes = [8, 32], strides = [1, 1]} : vector<8x128xf32> to vector<8x32xf32>
    %326 = vector.extract_strided_slice %324 {offsets = [0, 32], sizes = [8, 32], strides = [1, 1]} : vector<8x128xf32> to vector<8x32xf32>
    %327 = vector.extract_strided_slice %324 {offsets = [0, 64], sizes = [8, 32], strides = [1, 1]} : vector<8x128xf32> to vector<8x32xf32>
    %328 = vector.extract_strided_slice %324 {offsets = [0, 96], sizes = [8, 32], strides = [1, 1]} : vector<8x128xf32> to vector<8x32xf32>
    %329 = arith.mulf %326, %290 : vector<8x32xf32>
    %330 = arith.mulf %325, %327 : vector<8x32xf32>
    %331 = arith.addf %329, %330 : vector<8x32xf32>
    %332 = math.tanh %331 : vector<8x32xf32>
    %333 = arith.mulf %328, %332 : vector<8x32xf32>
    %cst_48 = arith.constant dense<0.000000e+00> : vector<8x128xf32>
    %334 = tpu.matmul %333, %24, %cst_48 {dimension_numbers = #tpu.dot_dimension_numbers<[1], [0], [0], [1], [0, 0, 1, 1], [], []>} : vector<8x32xf32>, vector<32x128xf32>, vector<8x128xf32> -> vector<8x128xf32>
    %335 = vector.extract_strided_slice %313 {offsets = [0, 128], sizes = [8, 128], strides = [1, 1]} : vector<8x256xf32> to vector<8x128xf32>
    %336 = arith.addf %334, %335 : vector<8x128xf32>
    %337 = arith.negf %336 : vector<8x128xf32>
    %338 = math.exp %337 : vector<8x128xf32>
    %cst_49 = arith.constant 1.000000e+00 : f32
    %339 = vector.broadcast %cst_49 : f32 to vector<8x128xf32>
    %340 = arith.addf %339, %338 : vector<8x128xf32>
    %341 = arith.divf %339, %340 : vector<8x128xf32>
    %342 = math.tanh %336 : vector<8x128xf32>
    %343 = arith.select %22, %342, %341 : vector<8x128xi1>, vector<8x128xf32>
    %344 = vector.extract_strided_slice %343 {offsets = [0, 0], sizes = [8, 32], strides = [1, 1]} : vector<8x128xf32> to vector<8x32xf32>
    %345 = vector.extract_strided_slice %343 {offsets = [0, 32], sizes = [8, 32], strides = [1, 1]} : vector<8x128xf32> to vector<8x32xf32>
    %346 = vector.extract_strided_slice %343 {offsets = [0, 64], sizes = [8, 32], strides = [1, 1]} : vector<8x128xf32> to vector<8x32xf32>
    %347 = vector.extract_strided_slice %343 {offsets = [0, 96], sizes = [8, 32], strides = [1, 1]} : vector<8x128xf32> to vector<8x32xf32>
    %348 = arith.mulf %345, %309 : vector<8x32xf32>
    %349 = arith.mulf %344, %346 : vector<8x32xf32>
    %350 = arith.addf %348, %349 : vector<8x32xf32>
    %351 = math.tanh %350 : vector<8x32xf32>
    %352 = arith.mulf %347, %351 : vector<8x32xf32>
    %353 = tpu.concatenate %65, %106, %147, %188, %229, %270, %311, %352 in 1 : vector<8x32xf32>, vector<8x32xf32>, vector<8x32xf32>, vector<8x32xf32>, vector<8x32xf32>, vector<8x32xf32>, vector<8x32xf32>, vector<8x32xf32> -> vector<8x256xf32>
    %c0_50 = arith.constant 0 : index
    %c0_51 = arith.constant 0 : index
    %354 = vector.load %arg9[%c0_50, %c0_51] : memref<8x256xf32, #tpu.memory_space<vmem>>, vector<8x256xf32>
    tpu.vector_store %arg9[%c0_50, %c0_51], %353 {strides = array<i32>} : memref<8x256xf32, #tpu.memory_space<vmem>>, vector<8x256xf32>,
    %355 = tpu.concatenate %333, %352, %331, %350 in 1 : vector<8x32xf32>, vector<8x32xf32>, vector<8x32xf32>, vector<8x32xf32> -> vector<8x128xf32>
    %c0_52 = arith.constant 0 : index
    %c0_53 = arith.constant 0 : index
    %356 = vector.load %arg10[%c0_52, %c0_53] : memref<8x128xf32, #tpu.memory_space<vmem>>, vector<8x128xf32>
    tpu.vector_store %arg10[%c0_52, %c0_53], %355 {strides = array<i32>} : memref<8x128xf32, #tpu.memory_space<vmem>>, vector<8x128xf32>,
    return
  }
  func.func @transform_0(%arg0: i32) -> (i32, i32) {
    %c0_i32 = arith.constant 0 : i32
    %c0_i32_0 = arith.constant 0 : i32
    %c0_i32_1 = arith.constant 0 : i32
    return %c0_i32, %c0_i32_0 : i32, i32
  }
  func.func @transform_1(%arg0: i32) -> (i32, i32) {
    %c0_i32 = arith.constant 0 : i32
    %c0_i32_0 = arith.constant 0 : i32
    %c0_i32_1 = arith.constant 0 : i32
    return %c0_i32, %c0_i32_0 : i32, i32
  }
  func.func @transform_2(%arg0: i32) -> (i32, i32) {
    %c0_i32 = arith.constant 0 : i32
    %c0_i32_0 = arith.constant 0 : i32
    %c0_i32_1 = arith.constant 0 : i32
    return %c0_i32, %c0_i32_0 : i32, i32
  }
  func.func @transform_3(%arg0: i32) -> (i32, i32) {
    %c0_i32 = arith.constant 0 : i32
    %c0_i32_0 = arith.constant 0 : i32
    %c0_i32_1 = arith.constant 0 : i32
    return %c0_i32, %c0_i32_0 : i32, i32
  }
  func.func @transform_4(%arg0: i32) -> (i32, i32) {
    %c0_i32 = arith.constant 0 : i32
    %c0_i32_0 = arith.constant 0 : i32
    %c0_i32_1 = arith.constant 0 : i32
    return %c0_i32, %c0_i32_0 : i32, i32
  }
  func.func @transform_5(%arg0: i32) -> (i32, i32) {
    %c0_i32 = arith.constant 0 : i32
    %c0_i32_0 = arith.constant 0 : i32
    %c0_i32_1 = arith.constant 0 : i32
    return %c0_i32, %c0_i32_0 : i32, i32
  }
  func.func @transform_6(%arg0: i32) -> (i32, i32) {
    %c0_i32 = arith.constant 0 : i32
    %c0_i32_0 = arith.constant 0 : i32
    %c0_i32_1 = arith.constant 0 : i32
    return %c0_i32, %c0_i32_0 : i32, i32
  }
  func.func @transform_7(%arg0: i32) -> (i32, i32) {
    %c0_i32 = arith.constant 0 : i32
    %c0_i32_0 = arith.constant 0 : i32
    %c0_i32_1 = arith.constant 0 : i32
    return %c0_i32, %c0_i32_0 : i32, i32
  }
  func.func @transform_8(%arg0: i32) -> (i32, i32) {
    %c0_i32 = arith.constant 0 : i32
    %c0_i32_0 = arith.constant 0 : i32
    %c0_i32_1 = arith.constant 0 : i32
    return %c0_i32, %c0_i32_0 : i32, i32
  }
  func.func @transform_9(%arg0: i32) -> (i32, i32) {
    %c0_i32 = arith.constant 0 : i32
    %c0_i32_0 = arith.constant 0 : i32
    %c0_i32_1 = arith.constant 0 : i32
    return %c0_i32, %c0_i32_0 : i32, i32
  }
}

</mosaic_0001>

<llo_original>
// kernel: allimg_core_sequence.1
$region0: #{allimg_core_sequence.1}
  #allocation0 [shape = 'u32[]', space=smem, size = 0x4, offset = 0x4, fixed_abs, tag = 'smem constant byte address 0x4 - core index']
  #allocation1 [shape = 'u32[144,128]{1,0:T(1,128)}', space=vmem, size = 0x12000, scoped, tag = 'internal scratch']
  %s0 = inlined_call_operand.vmem [shape: f32[64,32], index: 0, kind: input, shape index: {}]
  %s1 = inlined_call_operand.vmem [shape: f32[8,64], index: 1, kind: input, shape index: {}]
  %s2 = inlined_call_operand.vmem [shape: f32[64,64], index: 2, kind: input, shape index: {}]
  %s3 = inlined_call_operand.vmem [shape: f32[1,64], index: 3, kind: input, shape index: {}]
  %s4 = inlined_call_operand.vmem [shape: f32[32,128], index: 4, kind: input, shape index: {}]
  %s5 = inlined_call_operand.vmem [shape: f32[64,128], index: 5, kind: input, shape index: {}]
  %s6 = inlined_call_operand.vmem [shape: f32[64,256], index: 6, kind: input, shape index: {}]
  %s7 = inlined_call_operand.vmem [shape: f32[32,128], index: 7, kind: input, shape index: {}]
  %s8 = inlined_call_operand.vmem [shape: f32[8,256], index: 8, kind: output, shape index: {0}]
  %s9 = inlined_call_operand.vmem [shape: f32[8,128], index: 9, kind: output, shape index: {1}]
  %10 = xla_tuple %s8, %s9
  %s11 = sld [smem:[#allocation0]]
  $region50: #{allimg_core_sequence.1} parent=0
    _
  %s13 = ssub.s32 1, %s11
  %s14 = scalar_select 0, %s13, %s11
  // Predicated region
  $region2: #{allimg_core_sequence.1} parent=0 // pred_check
    _
  $region3: #{allimg_core_sequence.1} parent=0 // pred_check_branch
    %16 = sbr.rel (0) target = $region5
  $region4: #{allimg_core_sequence.1} parent=0 // pred_region
    _
  $region5: #{allimg_core_sequence.1} parent=0 // pred_fallthru
    _
  // Predicated region
  $region6: #{allimg_core_sequence.1} parent=0 // pred_check
    _
  $region7: #{allimg_core_sequence.1} parent=0 // pred_check_branch
    %18 = sbr.rel (0) target = $region9
  $region8: #{allimg_core_sequence.1} parent=0 // pred_region
    _
  $region9: #{allimg_core_sequence.1} parent=0 // pred_fallthru
    _
  // Predicated region
  $region10: #{allimg_core_sequence.1} parent=0 // pred_check
    _
  $region11: #{allimg_core_sequence.1} parent=0 // pred_check_branch
    %20 = sbr.rel (0) target = $region13
  $region12: #{allimg_core_sequence.1} parent=0 // pred_region
    _
  $region13: #{allimg_core_sequence.1} parent=0 // pred_fallthru
    _
  // Predicated region
  $region14: #{allimg_core_sequence.1} parent=0 // pred_check
    _
  $region15: #{allimg_core_sequence.1} parent=0 // pred_check_branch
    %22 = sbr.rel (0) target = $region17
  $region16: #{allimg_core_sequence.1} parent=0 // pred_region
    _
  $region17: #{allimg_core_sequence.1} parent=0 // pred_fallthru
    _
  // Predicated region
  $region18: #{allimg_core_sequence.1} parent=0 // pred_check
    _
  $region19: #{allimg_core_sequence.1} parent=0 // pred_check_branch
    %24 = sbr.rel (0) target = $region21
  $region20: #{allimg_core_sequence.1} parent=0 // pred_region
    _
  $region21: #{allimg_core_sequence.1} parent=0 // pred_fallthru
    _
  // Predicated region
  $region22: #{allimg_core_sequence.1} parent=0 // pred_check
    _
  $region23: #{allimg_core_sequence.1} parent=0 // pred_check_branch
    %26 = sbr.rel (0) target = $region25
  $region24: #{allimg_core_sequence.1} parent=0 // pred_region
    _
  $region25: #{allimg_core_sequence.1} parent=0 // pred_fallthru
    _
  // Predicated region
  $region26: #{allimg_core_sequence.1} parent=0 // pred_check
    _
  $region27: #{allimg_core_sequence.1} parent=0 // pred_check_branch
    %28 = sbr.rel (0) target = $region29
  $region28: #{allimg_core_sequence.1} parent=0 // pred_region
    _
  $region29: #{allimg_core_sequence.1} parent=0 // pred_fallthru
    _
  // Predicated region
  $region30: #{allimg_core_sequence.1} parent=0 // pred_check
    _
  $region31: #{allimg_core_sequence.1} parent=0 // pred_check_branch
    %30 = sbr.rel (0) target = $region33
  $region32: #{allimg_core_sequence.1} parent=0 // pred_region
    _
  $region33: #{allimg_core_sequence.1} parent=0 // pred_fallthru
    _
  %v31 = vld [vmem:[%s1] sm:$0xff]
  %v32 = vld [vmem:[%s2] sm:$0xff]
  %v33 = vld [vmem:[%s2 + $0x8] sm:$0xff]
  %v34 = vld [vmem:[%s2 + $0x10] sm:$0xff]
  %v35 = vld [vmem:[%s2 + $0x18] sm:$0xff]
  %v36 = vld [vmem:[%s2 + $0x20] sm:$0xff]
  %v37 = vld [vmem:[%s2 + $0x28] sm:$0xff]
  %v38 = vld [vmem:[%s2 + $0x30] sm:$0xff]
  %v39 = vld [vmem:[%s2 + $0x38] sm:$0xff]
  %v40 = vld [vmem:[%s3] sm:$0x1]
  %v42 = vlaneseq
  %v43 = vshrl.u32 %v42, 7
  %v44 = vsub.s32 0, %v43
  %v45 = vrot.slane %v40, %v44
  %vm47 = vcmask 523264
  %v49 = vsel %vm47, %v31, 0
  %51 = vmatprep.subr.mxu0 0.0
  %52 = vmatpush1.msra.mxu0 %v32
  %53 = vmatprep.subr.mxu0 0.0
  %54 = vmatpush1.msra.mxu0 %v33
  %55 = vmatprep.subr.mxu0 0.0
  %56 = vmatpush1.msra.mxu0 %v34
  %57 = vmatprep.subr.mxu0 0.0
  %58 = vmatpush1.msra.mxu0 %v35
  %59 = vmatprep.subr.mxu0 0.0
  %60 = vmatpush1.msra.mxu0 %v36
  %61 = vmatprep.subr.mxu0 0.0
  %62 = vmatpush1.msra.mxu0 %v37
  %63 = vmatprep.subr.mxu0 0.0
  %64 = vmatpush1.msra.mxu0 %v38
  %65 = vmatprep.subr.mxu0 0.0
  %66 = vmatpush1.msra.mxu0 %v39
  %67 = vmatprep.subr.mxu0 0.0
  %68 = vmatpush1.msra.mxu0 0.0
  %69 = vmatprep.subr.mxu0 0.0
  %70 = vmatpush1.msra.mxu0 0.0
  %71 = vmatprep.subr.mxu0 0.0
  %72 = vmatpush1.msra.mxu0 0.0
  %73 = vmatprep.subr.mxu0 0.0
  %74 = vmatpush1.msra.mxu0 0.0
  %75 = vmatprep.subr.mxu0 0.0
  %76 = vmatpush1.msra.mxu0 0.0
  %77 = vmatprep.subr.mxu0 0.0
  %78 = vmatpush1.msra.mxu0 0.0
  %79 = vmatprep.subr.mxu0 0.0
  %80 = vmatpush1.msra.mxu0 0.0
  %81 = vmatprep.subr.mxu0 0.0
  %82 = vmatpush1.msra.mxu0 0.0
  %83 = vmatprep.subr.mxu0 0.0
  %84 = vmatpush1.msra.mxu0 0.0
  %85 = vmatprep.subr.mxu0 0.0
  %86 = vmatpush1.msra.mxu0 0.0
  %87 = vmatprep.subr.mxu0 0.0
  %88 = vmatpush1.msra.mxu0 0.0
  %89 = vmatprep.subr.mxu0 0.0
  %90 = vmatpush1.msra.mxu0 0.0
  %91 = vmatprep.subr.mxu0 0.0
  %92 = vmatpush1.msra.mxu0 0.0
  %93 = vmatprep.subr.mxu0 0.0
  %94 = vmatpush1.msra.mxu0 0.0
  %95 = vmatprep.subr.mxu0 0.0
  %96 = vmatpush1.msra.mxu0 0.0
  %97 = vmatprep.subr.mxu0 0.0
  %98 = vmatpush1.msra.mxu0 0.0
  %99 = vmatprep.subr.mxu0 0.0
  %100 = vmatpush1.msra.mxu0 0.0
  %101 = vmatprep.subr.mxu0 0.0
  %102 = vmatpush1.msra.mxu0 0.0
  %103 = vmatprep.subr.mxu0 0.0
  %104 = vmatpush1.msra.mxu0 0.0
  %105 = vmatprep.subr.mxu0 0.0
  %106 = vmatpush1.msra.mxu0 0.0
  %107 = vmatprep.subr.mxu0 0.0
  %108 = vmatpush1.msra.mxu0 0.0
  %109 = vmatprep.subr.mxu0 0.0
  %110 = vmatpush1.msra.mxu0 0.0
  %111 = vmatprep.subr.mxu0 0.0
  %112 = vmatpush1.msra.mxu0 0.0
  %113 = vmatprep.subr.mxu0 0.0
  %114 = vmatpush1.msra.mxu0 0.0
  %115 = vmatprep.mubr.f32.mxu0 0.0
  %116 = vmatmul.mubr.f32.gmra.mrb[0].mxu0 %v49
  %v117 = vpop.f32.mrb[0].mxu0
  %v118 = vadd.f32 %v45, %v117
  %v119 = vpop.f32.mrb[0].mxu0
  %120 = vdwg.mxu0
  %v121 = vld [vmem:[%s0] sm:$0xff]
  %v122 = vld [vmem:[%s0 + $0x8] sm:$0xff]
  %v123 = vld [vmem:[%s0 + $0x10] sm:$0xff]
  %v124 = vld [vmem:[%s0 + $0x18] sm:$0xff]
  %v125 = vld [vmem:[%s0 + $0x20] sm:$0xff]
  %v126 = vld [vmem:[%s0 + $0x28] sm:$0xff]
  %v127 = vld [vmem:[%s0 + $0x30] sm:$0xff]
  %v128 = vld [vmem:[%s0 + $0x38] sm:$0xff]
  %v129 = vmax.f32 %v121, 0.0
  %v130 = vmax.f32 %v122, 0.0
  %v131 = vmax.f32 %v123, 0.0
  %v132 = vmax.f32 %v124, 0.0
  %v133 = vmax.f32 %v125, 0.0
  %v134 = vmax.f32 %v126, 0.0
  %v135 = vmax.f32 %v127, 0.0
  %v136 = vmax.f32 %v128, 0.0
  %v137 = vld [vmem:[%s4] sm:$0xff]
  %v138 = vld [vmem:[%s4 + $0x8] sm:$0xff]
  %v139 = vld [vmem:[%s4 + $0x10] sm:$0xff]
  %v140 = vld [vmem:[%s4 + $0x18] sm:$0xff]
  %vm141 = vcmask 261120
  %v143 = vsel %vm141, %v129, 0
  %v146 = vsel %vm141, %v130, 0
  %v149 = vsel %vm141, %v131, 0
  %v152 = vsel %vm141, %v132, 0
  %v155 = vsel %vm141, %v133, 0
  %v158 = vsel %vm141, %v134, 0
  %v161 = vsel %vm141, %v135, 0
  %v164 = vsel %vm141, %v136, 0
  %166 = vmatprep.subr.mxu0 0.0
  %167 = vmatpush1.msra.mxu0 %v137
  %168 = vmatprep.subr.mxu0 0.0
  %169 = vmatpush1.msra.mxu0 %v138
  %170 = vmatprep.subr.mxu0 0.0
  %171 = vmatpush1.msra.mxu0 %v139
  %172 = vmatprep.subr.mxu0 0.0
  %173 = vmatpush1.msra.mxu0 %v140
  %174 = vmatprep.subr.mxu0 0.0
  %175 = vmatpush1.msra.mxu0 0.0
  %176 = vmatprep.subr.mxu0 0.0
  %177 = vmatpush1.msra.mxu0 0.0
  %178 = vmatprep.subr.mxu0 0.0
  %179 = vmatpush1.msra.mxu0 0.0
  %180 = vmatprep.subr.mxu0 0.0
  %181 = vmatpush1.msra.mxu0 0.0
  %182 = vmatprep.subr.mxu0 0.0
  %183 = vmatpush1.msra.mxu0 0.0
  %184 = vmatprep.subr.mxu0 0.0
  %185 = vmatpush1.msra.mxu0 0.0
  %186 = vmatprep.subr.mxu0 0.0
  %187 = vmatpush1.msra.mxu0 0.0
  %188 = vmatprep.subr.mxu0 0.0
  %189 = vmatpush1.msra.mxu0 0.0
  %190 = vmatprep.subr.mxu0 0.0
  %191 = vmatpush1.msra.mxu0 0.0
  %192 = vmatprep.subr.mxu0 0.0
  %193 = vmatpush1.msra.mxu0 0.0
  %194 = vmatprep.subr.mxu0 0.0
  %195 = vmatpush1.msra.mxu0 0.0
  %196 = vmatprep.subr.mxu0 0.0
  %197 = vmatpush1.msra.mxu0 0.0
  %198 = vmatprep.subr.mxu0 0.0
  %199 = vmatpush1.msra.mxu0 0.0
  %200 = vmatprep.subr.mxu0 0.0
  %201 = vmatpush1.msra.mxu0 0.0
  %202 = vmatprep.subr.mxu0 0.0
  %203 = vmatpush1.msra.mxu0 0.0
  %204 = vmatprep.subr.mxu0 0.0
  %205 = vmatpush1.msra.mxu0 0.0
  %206 = vmatprep.subr.mxu0 0.0
  %207 = vmatpush1.msra.mxu0 0.0
  %208 = vmatprep.subr.mxu0 0.0
  %209 = vmatpush1.msra.mxu0 0.0
  %210 = vmatprep.subr.mxu0 0.0
  %211 = vmatpush1.msra.mxu0 0.0
  %212 = vmatprep.subr.mxu0 0.0
  %213 = vmatpush1.msra.mxu0 0.0
  %214 = vmatprep.subr.mxu0 0.0
  %215 = vmatpush1.msra.mxu0 0.0
  %216 = vmatprep.subr.mxu0 0.0
  %217 = vmatpush1.msra.mxu0 0.0
  %218 = vmatprep.subr.mxu0 0.0
  %219 = vmatpush1.msra.mxu0 0.0
  %220 = vmatprep.subr.mxu0 0.0
  %221 = vmatpush1.msra.mxu0 0.0
  %222 = vmatprep.subr.mxu0 0.0
  %223 = vmatpush1.msra.mxu0 0.0
  %224 = vmatprep.subr.mxu0 0.0
  %225 = vmatpush1.msra.mxu0 0.0
  %226 = vmatprep.subr.mxu0 0.0
  %227 = vmatpush1.msra.mxu0 0.0
  %228 = vmatprep.subr.mxu0 0.0
  %229 = vmatpush1.msra.mxu0 0.0
  %230 = vmatprep.mubr.f32.mxu0 0.0
  %231 = vmatmul.mubr.f32.gmra.mrb[0].mxu0 %v143
  %v232 = vpop.f32.mrb[0].mxu0
  %v233 = vadd.f32 0.0, %v232
  %v234 = vpop.f32.mrb[0].mxu0
  %235 = vmatprep.mubr.f32.mxu0 0.0
  %236 = vmatmul.mubr.f32.gmra.mrb[0].mxu0 %v146
  %v237 = vpop.f32.mrb[0].mxu0
  %v238 = vadd.f32 0.0, %v237
  %v239 = vpop.f32.mrb[0].mxu0
  %240 = vmatprep.mubr.f32.mxu0 0.0
  %241 = vmatmul.mubr.f32.gmra.mrb[0].mxu0 %v149
  %v242 = vpop.f32.mrb[0].mxu0
  %v243 = vadd.f32 0.0, %v242
  %v244 = vpop.f32.mrb[0].mxu0
  %245 = vmatprep.mubr.f32.mxu0 0.0
  %246 = vmatmul.mubr.f32.gmra.mrb[0].mxu0 %v152
  %v247 = vpop.f32.mrb[0].mxu0
  %v248 = vadd.f32 0.0, %v247
  %v249 = vpop.f32.mrb[0].mxu0
  %250 = vmatprep.mubr.f32.mxu0 0.0
  %251 = vmatmul.mubr.f32.gmra.mrb[0].mxu0 %v155
  %v252 = vpop.f32.mrb[0].mxu0
  %v253 = vadd.f32 0.0, %v252
  %v254 = vpop.f32.mrb[0].mxu0
  %255 = vmatprep.mubr.f32.mxu0 0.0
  %256 = vmatmul.mubr.f32.gmra.mrb[0].mxu0 %v158
  %v257 = vpop.f32.mrb[0].mxu0
  %v258 = vadd.f32 0.0, %v257
  %v259 = vpop.f32.mrb[0].mxu0
  %260 = vmatprep.mubr.f32.mxu0 0.0
  %261 = vmatmul.mubr.f32.gmra.mrb[0].mxu0 %v161
  %v262 = vpop.f32.mrb[0].mxu0
  %v263 = vadd.f32 0.0, %v262
  %v264 = vpop.f32.mrb[0].mxu0
  %265 = vmatprep.mubr.f32.mxu0 0.0
  %266 = vmatmul.mubr.f32.gmra.mrb[0].mxu0 %v164
  %v267 = vpop.f32.mrb[0].mxu0
  %v268 = vadd.f32 0.0, %v267
  %v269 = vpop.f32.mrb[0].mxu0
  %270 = vdwg.mxu0
  %v271 = vld [vmem:[%s5] sm:$0xff]
  %v272 = vld [vmem:[%s5 + $0x8] sm:$0xff]
  %v273 = vld [vmem:[%s5 + $0x10] sm:$0xff]
  %v274 = vld [vmem:[%s5 + $0x18] sm:$0xff]
  %v275 = vld [vmem:[%s5 + $0x20] sm:$0xff]
  %v276 = vld [vmem:[%s5 + $0x28] sm:$0xff]
  %v277 = vld [vmem:[%s5 + $0x30] sm:$0xff]
  %v278 = vld [vmem:[%s5 + $0x38] sm:$0xff]
  %279 = vmatprep.subr.mxu0 0.0
  %280 = vmatpush1.msra.mxu0 %v271
  %281 = vmatprep.subr.mxu0 0.0
  %282 = vmatpush1.msra.mxu0 %v272
  %283 = vmatprep.subr.mxu0 0.0
  %284 = vmatpush1.msra.mxu0 %v273
  %285 = vmatprep.subr.mxu0 0.0
  %286 = vmatpush1.msra.mxu0 %v274
  %287 = vmatprep.subr.mxu0 0.0
  %288 = vmatpush1.msra.mxu0 %v275
  %289 = vmatprep.subr.mxu0 0.0
  %290 = vmatpush1.msra.mxu0 %v276
  %291 = vmatprep.subr.mxu0 0.0
  %292 = vmatpush1.msra.mxu0 %v277
  %293 = vmatprep.subr.mxu0 0.0
  %294 = vmatpush1.msra.mxu0 %v278
  %295 = vmatprep.subr.mxu0 0.0
  %296 = vmatpush1.msra.mxu0 0.0
  %297 = vmatprep.subr.mxu0 0.0
  %298 = vmatpush1.msra.mxu0 0.0
  %299 = vmatprep.subr.mxu0 0.0
  %300 = vmatpush1.msra.mxu0 0.0
  %301 = vmatprep.subr.mxu0 0.0
  %302 = vmatpush1.msra.mxu0 0.0
  %303 = vmatprep.subr.mxu0 0.0
  %304 = vmatpush1.msra.mxu0 0.0
  %305 = vmatprep.subr.mxu0 0.0
  %306 = vmatpush1.msra.mxu0 0.0
  %307 = vmatprep.subr.mxu0 0.0
  %308 = vmatpush1.msra.mxu0 0.0
  %309 = vmatprep.subr.mxu0 0.0
  %310 = vmatpush1.msra.mxu0 0.0
  %311 = vmatprep.subr.mxu0 0.0
  %312 = vmatpush1.msra.mxu0 0.0
  %313 = vmatprep.subr.mxu0 0.0
  %314 = vmatpush1.msra.mxu0 0.0
  %315 = vmatprep.subr.mxu0 0.0
  %316 = vmatpush1.msra.mxu0 0.0
  %317 = vmatprep.subr.mxu0 0.0
  %318 = vmatpush1.msra.mxu0 0.0
  %319 = vmatprep.subr.mxu0 0.0
  %320 = vmatpush1.msra.mxu0 0.0
  %321 = vmatprep.subr.mxu0 0.0
  %322 = vmatpush1.msra.mxu0 0.0
  %323 = vmatprep.subr.mxu0 0.0
  %324 = vmatpush1.msra.mxu0 0.0
  %325 = vmatprep.subr.mxu0 0.0
  %326 = vmatpush1.msra.mxu0 0.0
  %327 = vmatprep.subr.mxu0 0.0
  %328 = vmatpush1.msra.mxu0 0.0
  %329 = vmatprep.subr.mxu0 0.0
  %330 = vmatpush1.msra.mxu0 0.0
  %331 = vmatprep.subr.mxu0 0.0
  %332 = vmatpush1.msra.mxu0 0.0
  %333 = vmatprep.subr.mxu0 0.0
  %334 = vmatpush1.msra.mxu0 0.0
  %335 = vmatprep.subr.mxu0 0.0
  %336 = vmatpush1.msra.mxu0 0.0
  %337 = vmatprep.subr.mxu0 0.0
  %338 = vmatpush1.msra.mxu0 0.0
  %339 = vmatprep.subr.mxu0 0.0
  %340 = vmatpush1.msra.mxu0 0.0
  %341 = vmatprep.subr.mxu0 0.0
  %342 = vmatpush1.msra.mxu0 0.0
  %343 = vmatprep.mubr.f32.mxu0 0.0
  %344 = vmatmul.mubr.f32.gmra.mrb[0].mxu0 %v49
  %v345 = vpop.f32.mrb[0].mxu0
  %v346 = vadd.f32 0.0, %v345
  %v347 = vpop.f32.mrb[0].mxu0
  %348 = vdwg.mxu0
  %v349 = vlaneseq
  %v350 = vand.u32 %v349, 127
  %vm351 = vcmp.ge.s32.totalorder %v350, 64
  %vm352 = vcmp.lt.s32.totalorder %v350, 96
  %vm353 = vmand %vm351, %vm352
  %v354 = vld [vmem:[%s6] sm:$0xff]
  %v355 = vld [vmem:[%s6 + $0x8] sm:$0xff]
  %v356 = vld [vmem:[%s6 + $0x10] sm:$0xff]
  %v357 = vld [vmem:[%s6 + $0x18] sm:$0xff]
  %v358 = vld [vmem:[%s6 + $0x20] sm:$0xff]
  %v359 = vld [vmem:[%s6 + $0x28] sm:$0xff]
  %v360 = vld [vmem:[%s6 + $0x30] sm:$0xff]
  %v361 = vld [vmem:[%s6 + $0x38] sm:$0xff]
  %v362 = vld [vmem:[%s6 + $0x40] sm:$0xff]
  %v363 = vld [vmem:[%s6 + $0x48] sm:$0xff]
  %v364 = vld [vmem:[%s6 + $0x50] sm:$0xff]
  %v365 = vld [vmem:[%s6 + $0x58] sm:$0xff]
  %v366 = vld [vmem:[%s6 + $0x60] sm:$0xff]
  %v367 = vld [vmem:[%s6 + $0x68] sm:$0xff]
  %v368 = vld [vmem:[%s6 + $0x70] sm:$0xff]
  %v369 = vld [vmem:[%s6 + $0x78] sm:$0xff]
  %v370 = vld [vmem:[%s7] sm:$0xff]
  %v371 = vld [vmem:[%s7 + $0x8] sm:$0xff]
  %v372 = vld [vmem:[%s7 + $0x10] sm:$0xff]
  %v373 = vld [vmem:[%s7 + $0x18] sm:$0xff]
  %v375 = vsel %vm47, %v118, 0
  %377 = vmatprep.subr.mxu0 %v355
  %378 = vmatpush1.msra.mxu0 %v354
  %379 = vmatprep.subr.mxu0 %v357
  %380 = vmatpush1.msra.mxu0 %v356
  %381 = vmatprep.subr.mxu0 %v359
  %382 = vmatpush1.msra.mxu0 %v358
  %383 = vmatprep.subr.mxu0 %v361
  %384 = vmatpush1.msra.mxu0 %v360
  %385 = vmatprep.subr.mxu0 %v363
  %386 = vmatpush1.msra.mxu0 %v362
  %387 = vmatprep.subr.mxu0 %v365
  %388 = vmatpush1.msra.mxu0 %v364
  %389 = vmatprep.subr.mxu0 %v367
  %390 = vmatpush1.msra.mxu0 %v366
  %391 = vmatprep.subr.mxu0 %v369
  %392 = vmatpush1.msra.mxu0 %v368
  %393 = vmatprep.subr.mxu0 0.0
  %394 = vmatpush1.msra.mxu0 0.0
  %395 = vmatprep.subr.mxu0 0.0
  %396 = vmatpush1.msra.mxu0 0.0
  %397 = vmatprep.subr.mxu0 0.0
  %398 = vmatpush1.msra.mxu0 0.0
  %399 = vmatprep.subr.mxu0 0.0
  %400 = vmatpush1.msra.mxu0 0.0
  %401 = vmatprep.subr.mxu0 0.0
  %402 = vmatpush1.msra.mxu0 0.0
  %403 = vmatprep.subr.mxu0 0.0
  %404 = vmatpush1.msra.mxu0 0.0
  %405 = vmatprep.subr.mxu0 0.0
  %406 = vmatpush1.msra.mxu0 0.0
  %407 = vmatprep.subr.mxu0 0.0
  %408 = vmatpush1.msra.mxu0 0.0
  %409 = vmatprep.subr.mxu0 0.0
  %410 = vmatpush1.msra.mxu0 0.0
  %411 = vmatprep.subr.mxu0 0.0
  %412 = vmatpush1.msra.mxu0 0.0
  %413 = vmatprep.subr.mxu0 0.0
  %414 = vmatpush1.msra.mxu0 0.0
  %415 = vmatprep.subr.mxu0 0.0
  %416 = vmatpush1.msra.mxu0 0.0
  %417 = vmatprep.subr.mxu0 0.0
  %418 = vmatpush1.msra.mxu0 0.0
  %419 = vmatprep.subr.mxu0 0.0
  %420 = vmatpush1.msra.mxu0 0.0
  %421 = vmatprep.subr.mxu0 0.0
  %422 = vmatpush1.msra.mxu0 0.0
  %423 = vmatprep.subr.mxu0 0.0
  %424 = vmatpush1.msra.mxu0 0.0
  %425 = vmatprep.subr.mxu0 0.0
  %426 = vmatpush1.msra.mxu0 0.0
  %427 = vmatprep.subr.mxu0 0.0
  %428 = vmatpush1.msra.mxu0 0.0
  %429 = vmatprep.subr.mxu0 0.0
  %430 = vmatpush1.msra.mxu0 0.0
  %431 = vmatprep.subr.mxu0 0.0
  %432 = vmatpush1.msra.mxu0 0.0
  %433 = vmatprep.subr.mxu0 0.0
  %434 = vmatpush1.msra.mxu0 0.0
  %435 = vmatprep.subr.mxu0 0.0
  %436 = vmatpush1.msra.mxu0 0.0
  %437 = vmatprep.subr.mxu0 0.0
  %438 = vmatpush1.msra.mxu0 0.0
  %439 = vmatprep.subr.mxu0 0.0
  %440 = vmatpush1.msra.mxu0 0.0
  %441 = vmatprep.mubr.f32.mxu0 0.0
  %442 = vmatmul.mubr.f32.gmra.mrb[0].mxu0 %v375
  %v443 = vpop.f32.mrb[0].mxu0
  %v444 = vadd.f32 0.0, %v443
  %v445 = vpop.f32.mrb[0].mxu0
  %v446 = vadd.f32 0.0, %v445
  %447 = vdwg.mxu0
  %v448 = vadd.f32 %v233, %v346
  %v449 = vadd.f32 %v448, %v444
  %v450 = vxor.u32 %v449, 2147483648
  %v451 = vmul.f32 %v450, 1.442695
  %v452 = vpow.pop %v451
  %v453 = vadd.f32 %v452, 1.0
  %v454 = vrcp.pop %v453
  %v455 = vmul.f32 1.0, %v454
  %v456 = vtanh.pop %v449
  %v457 = vsel %vm353, %v456, %v455
  %458 = vrot.lane.b32.xlu0 %v118, 32
  %v459 = vpop.permute.xlu0 %458
  %v461 = vmul.f32 %v457, %v459
  %463 = vrot.lane.b32.xlu0 %v457, 64
  %v464 = vpop.permute.xlu0 %463
  %v466 = vmul.f32 %v457, %v464
  %468 = vrot.lane.b32.xlu0 %v466, 32
  %v469 = vpop.permute.xlu0 %468
  %v471 = vadd.f32 %v461, %v469
  %v472 = vtanh.pop %v471
  %474 = vrot.lane.b32.xlu0 %v472, 64
  %v475 = vpop.permute.xlu0 %474
  %v477 = vmul.f32 %v457, %v475
  %479 = vrot.lane.b32.xlu0 %v477, 32
  %v480 = vpop.permute.xlu0 %479
  %v481 = vsel %vm141, %v480, 0
  %483 = vmatprep.subr.mxu0 0.0
  %484 = vmatpush1.msra.mxu0 %v370
  %485 = vmatprep.subr.mxu0 0.0
  %486 = vmatpush1.msra.mxu0 %v371
  %487 = vmatprep.subr.mxu0 0.0
  %488 = vmatpush1.msra.mxu0 %v372
  %489 = vmatprep.subr.mxu0 0.0
  %490 = vmatpush1.msra.mxu0 %v373
  %491 = vmatprep.subr.mxu0 0.0
  %492 = vmatpush1.msra.mxu0 0.0
  %493 = vmatprep.subr.mxu0 0.0
  %494 = vmatpush1.msra.mxu0 0.0
  %495 = vmatprep.subr.mxu0 0.0
  %496 = vmatpush1.msra.mxu0 0.0
  %497 = vmatprep.subr.mxu0 0.0
  %498 = vmatpush1.msra.mxu0 0.0
  %499 = vmatprep.subr.mxu0 0.0
  %500 = vmatpush1.msra.mxu0 0.0
  %501 = vmatprep.subr.mxu0 0.0
  %502 = vmatpush1.msra.mxu0 0.0
  %503 = vmatprep.subr.mxu0 0.0
  %504 = vmatpush1.msra.mxu0 0.0
  %505 = vmatprep.subr.mxu0 0.0
  %506 = vmatpush1.msra.mxu0 0.0
  %507 = vmatprep.subr.mxu0 0.0
  %508 = vmatpush1.msra.mxu0 0.0
  %509 = vmatprep.subr.mxu0 0.0
  %510 = vmatpush1.msra.mxu0 0.0
  %511 = vmatprep.subr.mxu0 0.0
  %512 = vmatpush1.msra.mxu0 0.0
  %513 = vmatprep.subr.mxu0 0.0
  %514 = vmatpush1.msra.mxu0 0.0
  %515 = vmatprep.subr.mxu0 0.0
  %516 = vmatpush1.msra.mxu0 0.0
  %517 = vmatprep.subr.mxu0 0.0
  %518 = vmatpush1.msra.mxu0 0.0
  %519 = vmatprep.subr.mxu0 0.0
  %520 = vmatpush1.msra.mxu0 0.0
  %521 = vmatprep.subr.mxu0 0.0
  %522 = vmatpush1.msra.mxu0 0.0
  %523 = vmatprep.subr.mxu0 0.0
  %524 = vmatpush1.msra.mxu0 0.0
  %525 = vmatprep.subr.mxu0 0.0
  %526 = vmatpush1.msra.mxu0 0.0
  %527 = vmatprep.subr.mxu0 0.0
  %528 = vmatpush1.msra.mxu0 0.0
  %529 = vmatprep.subr.mxu0 0.0
  %530 = vmatpush1.msra.mxu0 0.0
  %531 = vmatprep.subr.mxu0 0.0
  %532 = vmatpush1.msra.mxu0 0.0
  %533 = vmatprep.subr.mxu0 0.0
  %534 = vmatpush1.msra.mxu0 0.0
  %535 = vmatprep.subr.mxu0 0.0
  %536 = vmatpush1.msra.mxu0 0.0
  %537 = vmatprep.subr.mxu0 0.0
  %538 = vmatpush1.msra.mxu0 0.0
  %539 = vmatprep.subr.mxu0 0.0
  %540 = vmatpush1.msra.mxu0 0.0
  %541 = vmatprep.subr.mxu0 0.0
  %542 = vmatpush1.msra.mxu0 0.0
  %543 = vmatprep.subr.mxu0 0.0
  %544 = vmatpush1.msra.mxu0 0.0
  %545 = vmatprep.subr.mxu0 0.0
  %546 = vmatpush1.msra.mxu0 0.0
  %547 = vmatprep.mubr.f32.mxu0 0.0
  %548 = vmatmul.mubr.f32.gmra.mrb[0].mxu0 %v481
  %v549 = vpop.f32.mrb[0].mxu0
  %v550 = vadd.f32 %v446, %v549
  %v551 = vpop.f32.mrb[0].mxu0
  %552 = vdwg.mxu0
  %v553 = vxor.u32 %v550, 2147483648
  %v554 = vmul.f32 %v553, 1.442695
  %v555 = vpow.pop %v554
  %v556 = vadd.f32 %v555, 1.0
  %v557 = vrcp.pop %v556
  %v558 = vmul.f32 1.0, %v557
  %v559 = vtanh.pop %v550
  %v560 = vsel %vm353, %v559, %v558
  %v561 = vmul.f32 %v560, %v118
  %563 = vrot.lane.b32.xlu0 %v560, 64
  %v564 = vpop.permute.xlu0 %563
  %v566 = vmul.f32 %v560, %v564
  %568 = vrot.lane.b32.xlu0 %v566, 32
  %v569 = vpop.permute.xlu0 %568
  %v571 = vadd.f32 %v561, %v569
  %v572 = vtanh.pop %v571
  %574 = vrot.lane.b32.xlu0 %v572, 64
  %v575 = vpop.permute.xlu0 %574
  %v577 = vmul.f32 %v560, %v575
  %580 = vrot.lane.b32.xlu0 %v577, 64
  %v581 = vpop.permute.xlu0 %580
  %v583 = vsel %vm141, %v480, %v581
  %v585 = vsel %vm47, %v583, 0
  %587 = vmatprep.subr.mxu0 %v355
  %588 = vmatpush1.msra.mxu0 %v354
  %589 = vmatprep.subr.mxu0 %v357
  %590 = vmatpush1.msra.mxu0 %v356
  %591 = vmatprep.subr.mxu0 %v359
  %592 = vmatpush1.msra.mxu0 %v358
  %593 = vmatprep.subr.mxu0 %v361
  %594 = vmatpush1.msra.mxu0 %v360
  %595 = vmatprep.subr.mxu0 %v363
  %596 = vmatpush1.msra.mxu0 %v362
  %597 = vmatprep.subr.mxu0 %v365
  %598 = vmatpush1.msra.mxu0 %v364
  %599 = vmatprep.subr.mxu0 %v367
  %600 = vmatpush1.msra.mxu0 %v366
  %601 = vmatprep.subr.mxu0 %v369
  %602 = vmatpush1.msra.mxu0 %v368
  %603 = vmatprep.subr.mxu0 0.0
  %604 = vmatpush1.msra.mxu0 0.0
  %605 = vmatprep.subr.mxu0 0.0
  %606 = vmatpush1.msra.mxu0 0.0
  %607 = vmatprep.subr.mxu0 0.0
  %608 = vmatpush1.msra.mxu0 0.0
  %609 = vmatprep.subr.mxu0 0.0
  %610 = vmatpush1.msra.mxu0 0.0
  %611 = vmatprep.subr.mxu0 0.0
  %612 = vmatpush1.msra.mxu0 0.0
  %613 = vmatprep.subr.mxu0 0.0
  %614 = vmatpush1.msra.mxu0 0.0
  %615 = vmatprep.subr.mxu0 0.0
  %616 = vmatpush1.msra.mxu0 0.0
  %617 = vmatprep.subr.mxu0 0.0
  %618 = vmatpush1.msra.mxu0 0.0
  %619 = vmatprep.subr.mxu0 0.0
  %620 = vmatpush1.msra.mxu0 0.0
  %621 = vmatprep.subr.mxu0 0.0
  %622 = vmatpush1.msra.mxu0 0.0
  %623 = vmatprep.subr.mxu0 0.0
  %624 = vmatpush1.msra.mxu0 0.0
  %625 = vmatprep.subr.mxu0 0.0
  %626 = vmatpush1.msra.mxu0 0.0
  %627 = vmatprep.subr.mxu0 0.0
  %628 = vmatpush1.msra.mxu0 0.0
  %629 = vmatprep.subr.mxu0 0.0
  %630 = vmatpush1.msra.mxu0 0.0
  %631 = vmatprep.subr.mxu0 0.0
  %632 = vmatpush1.msra.mxu0 0.0
  %633 = vmatprep.subr.mxu0 0.0
  %634 = vmatpush1.msra.mxu0 0.0
  %635 = vmatprep.subr.mxu0 0.0
  %636 = vmatpush1.msra.mxu0 0.0
  %637 = vmatprep.subr.mxu0 0.0
  %638 = vmatpush1.msra.mxu0 0.0
  %639 = vmatprep.subr.mxu0 0.0
  %640 = vmatpush1.msra.mxu0 0.0
  %641 = vmatprep.subr.mxu0 0.0
  %642 = vmatpush1.msra.mxu0 0.0
  %643 = vmatprep.subr.mxu0 0.0
  %644 = vmatpush1.msra.mxu0 0.0
  %645 = vmatprep.subr.mxu0 0.0
  %646 = vmatpush1.msra.mxu0 0.0
  %647 = vmatprep.subr.mxu0 0.0
  %648 = vmatpush1.msra.mxu0 0.0
  %649 = vmatprep.subr.mxu0 0.0
  %650 = vmatpush1.msra.mxu0 0.0
  %651 = vmatprep.mubr.f32.mxu0 0.0
  %652 = vmatmul.mubr.f32.gmra.mrb[0].mxu0 %v585
  %v653 = vpop.f32.mrb[0].mxu0
  %v654 = vadd.f32 0.0, %v653
  %v655 = vpop.f32.mrb[0].mxu0
  %v656 = vadd.f32 0.0, %v655
  %657 = vdwg.mxu0
  %v658 = vadd.f32 %v238, %v346
  %v659 = vadd.f32 %v658, %v654
  %v660 = vxor.u32 %v659, 2147483648
  %v661 = vmul.f32 %v660, 1.442695
  %v662 = vpow.pop %v661
  %v663 = vadd.f32 %v662, 1.0
  %v664 = vrcp.pop %v663
  %v665 = vmul.f32 1.0, %v664
  %v666 = vtanh.pop %v659
  %v667 = vsel %vm353, %v666, %v665
  %v668 = vmul.f32 %v667, %v471
  %670 = vrot.lane.b32.xlu0 %v667, 64
  %v671 = vpop.permute.xlu0 %670
  %v673 = vmul.f32 %v667, %v671
  %675 = vrot.lane.b32.xlu0 %v673, 32
  %v676 = vpop.permute.xlu0 %675
  %v678 = vadd.f32 %v668, %v676
  %v679 = vtanh.pop %v678
  %681 = vrot.lane.b32.xlu0 %v679, 64
  %v682 = vpop.permute.xlu0 %681
  %v684 = vmul.f32 %v667, %v682
  %686 = vrot.lane.b32.xlu0 %v684, 32
  %v687 = vpop.permute.xlu0 %686
  %v688 = vsel %vm141, %v687, 0
  %690 = vmatprep.subr.mxu0 0.0
  %691 = vmatpush1.msra.mxu0 %v370
  %692 = vmatprep.subr.mxu0 0.0
  %693 = vmatpush1.msra.mxu0 %v371
  %694 = vmatprep.subr.mxu0 0.0
  %695 = vmatpush1.msra.mxu0 %v372
  %696 = vmatprep.subr.mxu0 0.0
  %697 = vmatpush1.msra.mxu0 %v373
  %698 = vmatprep.subr.mxu0 0.0
  %699 = vmatpush1.msra.mxu0 0.0
  %700 = vmatprep.subr.mxu0 0.0
  %701 = vmatpush1.msra.mxu0 0.0
  %702 = vmatprep.subr.mxu0 0.0
  %703 = vmatpush1.msra.mxu0 0.0
  %704 = vmatprep.subr.mxu0 0.0
  %705 = vmatpush1.msra.mxu0 0.0
  %706 = vmatprep.subr.mxu0 0.0
  %707 = vmatpush1.msra.mxu0 0.0
  %708 = vmatprep.subr.mxu0 0.0
  %709 = vmatpush1.msra.mxu0 0.0
  %710 = vmatprep.subr.mxu0 0.0
  %711 = vmatpush1.msra.mxu0 0.0
  %712 = vmatprep.subr.mxu0 0.0
  %713 = vmatpush1.msra.mxu0 0.0
  %714 = vmatprep.subr.mxu0 0.0
  %715 = vmatpush1.msra.mxu0 0.0
  %716 = vmatprep.subr.mxu0 0.0
  %717 = vmatpush1.msra.mxu0 0.0
  %718 = vmatprep.subr.mxu0 0.0
  %719 = vmatpush1.msra.mxu0 0.0
  %720 = vmatprep.subr.mxu0 0.0
  %721 = vmatpush1.msra.mxu0 0.0
  %722 = vmatprep.subr.mxu0 0.0
  %723 = vmatpush1.msra.mxu0 0.0
  %724 = vmatprep.subr.mxu0 0.0
  %725 = vmatpush1.msra.mxu0 0.0
  %726 = vmatprep.subr.mxu0 0.0
  %727 = vmatpush1.msra.mxu0 0.0
  %728 = vmatprep.subr.mxu0 0.0
  %729 = vmatpush1.msra.mxu0 0.0
  %730 = vmatprep.subr.mxu0 0.0
  %731 = vmatpush1.msra.mxu0 0.0
  %732 = vmatprep.subr.mxu0 0.0
  %733 = vmatpush1.msra.mxu0 0.0
  %734 = vmatprep.subr.mxu0 0.0
  %735 = vmatpush1.msra.mxu0 0.0
  %736 = vmatprep.subr.mxu0 0.0
  %737 = vmatpush1.msra.mxu0 0.0
  %738 = vmatprep.subr.mxu0 0.0
  %739 = vmatpush1.msra.mxu0 0.0
  %740 = vmatprep.subr.mxu0 0.0
  %741 = vmatpush1.msra.mxu0 0.0
  %742 = vmatprep.subr.mxu0 0.0
  %743 = vmatpush1.msra.mxu0 0.0
  %744 = vmatprep.subr.mxu0 0.0
  %745 = vmatpush1.msra.mxu0 0.0
  %746 = vmatprep.subr.mxu0 0.0
  %747 = vmatpush1.msra.mxu0 0.0
  %748 = vmatprep.subr.mxu0 0.0
  %749 = vmatpush1.msra.mxu0 0.0
  %750 = vmatprep.subr.mxu0 0.0
  %751 = vmatpush1.msra.mxu0 0.0
  %752 = vmatprep.subr.mxu0 0.0
  %753 = vmatpush1.msra.mxu0 0.0
  %754 = vmatprep.mubr.f32.mxu0 0.0
  %755 = vmatmul.mubr.f32.gmra.mrb[0].mxu0 %v688
  %v756 = vpop.f32.mrb[0].mxu0
  %v757 = vadd.f32 %v656, %v756
  %v758 = vpop.f32.mrb[0].mxu0
  %759 = vdwg.mxu0
  %v760 = vxor.u32 %v757, 2147483648
  %v761 = vmul.f32 %v760, 1.442695
  %v762 = vpow.pop %v761
  %v763 = vadd.f32 %v762, 1.0
  %v764 = vrcp.pop %v763
  %v765 = vmul.f32 1.0, %v764
  %v766 = vtanh.pop %v757
  %v767 = vsel %vm353, %v766, %v765
  %v768 = vmul.f32 %v767, %v571
  %770 = vrot.lane.b32.xlu0 %v767, 64
  %v771 = vpop.permute.xlu0 %770
  %v773 = vmul.f32 %v767, %v771
  %775 = vrot.lane.b32.xlu0 %v773, 32
  %v776 = vpop.permute.xlu0 %775
  %v778 = vadd.f32 %v768, %v776
  %v779 = vtanh.pop %v778
  %781 = vrot.lane.b32.xlu0 %v779, 64
  %v782 = vpop.permute.xlu0 %781
  %v784 = vmul.f32 %v767, %v782
  %787 = vrot.lane.b32.xlu0 %v784, 64
  %v788 = vpop.permute.xlu0 %787
  %v790 = vsel %vm141, %v687, %v788
  %v792 = vsel %vm47, %v790, 0
  %794 = vmatprep.subr.mxu0 %v355
  %795 = vmatpush1.msra.mxu0 %v354
  %796 = vmatprep.subr.mxu0 %v357
  %797 = vmatpush1.msra.mxu0 %v356
  %798 = vmatprep.subr.mxu0 %v359
  %799 = vmatpush1.msra.mxu0 %v358
  %800 = vmatprep.subr.mxu0 %v361
  %801 = vmatpush1.msra.mxu0 %v360
  %802 = vmatprep.subr.mxu0 %v363
  %803 = vmatpush1.msra.mxu0 %v362
  %804 = vmatprep.subr.mxu0 %v365
  %805 = vmatpush1.msra.mxu0 %v364
  %806 = vmatprep.subr.mxu0 %v367
  %807 = vmatpush1.msra.mxu0 %v366
  %808 = vmatprep.subr.mxu0 %v369
  %809 = vmatpush1.msra.mxu0 %v368
  %810 = vmatprep.subr.mxu0 0.0
  %811 = vmatpush1.msra.mxu0 0.0
  %812 = vmatprep.subr.mxu0 0.0
  %813 = vmatpush1.msra.mxu0 0.0
  %814 = vmatprep.subr.mxu0 0.0
  %815 = vmatpush1.msra.mxu0 0.0
  %816 = vmatprep.subr.mxu0 0.0
  %817 = vmatpush1.msra.mxu0 0.0
  %818 = vmatprep.subr.mxu0 0.0
  %819 = vmatpush1.msra.mxu0 0.0
  %820 = vmatprep.subr.mxu0 0.0
  %821 = vmatpush1.msra.mxu0 0.0
  %822 = vmatprep.subr.mxu0 0.0
  %823 = vmatpush1.msra.mxu0 0.0
  %824 = vmatprep.subr.mxu0 0.0
  %825 = vmatpush1.msra.mxu0 0.0
  %826 = vmatprep.subr.mxu0 0.0
  %827 = vmatpush1.msra.mxu0 0.0
  %828 = vmatprep.subr.mxu0 0.0
  %829 = vmatpush1.msra.mxu0 0.0
  %830 = vmatprep.subr.mxu0 0.0
  %831 = vmatpush1.msra.mxu0 0.0
  %832 = vmatprep.subr.mxu0 0.0
  %833 = vmatpush1.msra.mxu0 0.0
  %834 = vmatprep.subr.mxu0 0.0
  %835 = vmatpush1.msra.mxu0 0.0
  %836 = vmatprep.subr.mxu0 0.0
  %837 = vmatpush1.msra.mxu0 0.0
  %838 = vmatprep.subr.mxu0 0.0
  %839 = vmatpush1.msra.mxu0 0.0
  %840 = vmatprep.subr.mxu0 0.0
  %841 = vmatpush1.msra.mxu0 0.0
  %842 = vmatprep.subr.mxu0 0.0
  %843 = vmatpush1.msra.mxu0 0.0
  %844 = vmatprep.subr.mxu0 0.0
  %845 = vmatpush1.msra.mxu0 0.0
  %846 = vmatprep.subr.mxu0 0.0
  %847 = vmatpush1.msra.mxu0 0.0
  %848 = vmatprep.subr.mxu0 0.0
  %849 = vmatpush1.msra.mxu0 0.0
  %850 = vmatprep.subr.mxu0 0.0
  %851 = vmatpush1.msra.mxu0 0.0
  %852 = vmatprep.subr.mxu0 0.0
  %853 = vmatpush1.msra.mxu0 0.0
  %854 = vmatprep.subr.mxu0 0.0
  %855 = vmatpush1.msra.mxu0 0.0
  %856 = vmatprep.subr.mxu0 0.0
  %857 = vmatpush1.msra.mxu0 0.0
  %858 = vmatprep.mubr.f32.mxu0 0.0
  %859 = vmatmul.mubr.f32.gmra.mrb[0].mxu0 %v792
  %v860 = vpop.f32.mrb[0].mxu0
  %v861 = vadd.f32 0.0, %v860
  %v862 = vpop.f32.mrb[0].mxu0
  %v863 = vadd.f32 0.0, %v862
  %864 = vdwg.mxu0
  %v865 = vadd.f32 %v243, %v346
  %v866 = vadd.f32 %v865, %v861
  %v867 = vxor.u32 %v866, 2147483648
  %v868 = vmul.f32 %v867, 1.442695
  %v869 = vpow.pop %v868
  %v870 = vadd.f32 %v869, 1.0
  %v871 = vrcp.pop %v870
  %v872 = vmul.f32 1.0, %v871
  %v873 = vtanh.pop %v866
  %v874 = vsel %vm353, %v873, %v872
  %v875 = vmul.f32 %v874, %v678
  %877 = vrot.lane.b32.xlu0 %v874, 64
  %v878 = vpop.permute.xlu0 %877
  %v880 = vmul.f32 %v874, %v878
  %882 = vrot.lane.b32.xlu0 %v880, 32
  %v883 = vpop.permute.xlu0 %882
  %v885 = vadd.f32 %v875, %v883
  %v886 = vtanh.pop %v885
  %888 = vrot.lane.b32.xlu0 %v886, 64
  %v889 = vpop.permute.xlu0 %888
  %v891 = vmul.f32 %v874, %v889
  %893 = vrot.lane.b32.xlu0 %v891, 32
  %v894 = vpop.permute.xlu0 %893
  %v895 = vsel %vm141, %v894, 0
  %897 = vmatprep.subr.mxu0 0.0
  %898 = vmatpush1.msra.mxu0 %v370
  %899 = vmatprep.subr.mxu0 0.0
  %900 = vmatpush1.msra.mxu0 %v371
  %901 = vmatprep.subr.mxu0 0.0
  %902 = vmatpush1.msra.mxu0 %v372
  %903 = vmatprep.subr.mxu0 0.0
  %904 = vmatpush1.msra.mxu0 %v373
  %905 = vmatprep.subr.mxu0 0.0
  %906 = vmatpush1.msra.mxu0 0.0
  %907 = vmatprep.subr.mxu0 0.0
  %908 = vmatpush1.msra.mxu0 0.0
  %909 = vmatprep.subr.mxu0 0.0
  %910 = vmatpush1.msra.mxu0 0.0
  %911 = vmatprep.subr.mxu0 0.0
  %912 = vmatpush1.msra.mxu0 0.0
  %913 = vmatprep.subr.mxu0 0.0
  %914 = vmatpush1.msra.mxu0 0.0
  %915 = vmatprep.subr.mxu0 0.0
  %916 = vmatpush1.msra.mxu0 0.0
  %917 = vmatprep.subr.mxu0 0.0
  %918 = vmatpush1.msra.mxu0 0.0
  %919 = vmatprep.subr.mxu0 0.0
  %920 = vmatpush1.msra.mxu0 0.0
  %921 = vmatprep.subr.mxu0 0.0
  %922 = vmatpush1.msra.mxu0 0.0
  %923 = vmatprep.subr.mxu0 0.0
  %924 = vmatpush1.msra.mxu0 0.0
  %925 = vmatprep.subr.mxu0 0.0
  %926 = vmatpush1.msra.mxu0 0.0
  %927 = vmatprep.subr.mxu0 0.0
  %928 = vmatpush1.msra.mxu0 0.0
  %929 = vmatprep.subr.mxu0 0.0
  %930 = vmatpush1.msra.mxu0 0.0
  %931 = vmatprep.subr.mxu0 0.0
  %932 = vmatpush1.msra.mxu0 0.0
  %933 = vmatprep.subr.mxu0 0.0
  %934 = vmatpush1.msra.mxu0 0.0
  %935 = vmatprep.subr.mxu0 0.0
  %936 = vmatpush1.msra.mxu0 0.0
  %937 = vmatprep.subr.mxu0 0.0
  %938 = vmatpush1.msra.mxu0 0.0
  %939 = vmatprep.subr.mxu0 0.0
  %940 = vmatpush1.msra.mxu0 0.0
  %941 = vmatprep.subr.mxu0 0.0
  %942 = vmatpush1.msra.mxu0 0.0
  %943 = vmatprep.subr.mxu0 0.0
  %944 = vmatpush1.msra.mxu0 0.0
  %945 = vmatprep.subr.mxu0 0.0
  %946 = vmatpush1.msra.mxu0 0.0
  %947 = vmatprep.subr.mxu0 0.0
  %948 = vmatpush1.msra.mxu0 0.0
  %949 = vmatprep.subr.mxu0 0.0
  %950 = vmatpush1.msra.mxu0 0.0
  %951 = vmatprep.subr.mxu0 0.0
  %952 = vmatpush1.msra.mxu0 0.0
  %953 = vmatprep.subr.mxu0 0.0
  %954 = vmatpush1.msra.mxu0 0.0
  %955 = vmatprep.subr.mxu0 0.0
  %956 = vmatpush1.msra.mxu0 0.0
  %957 = vmatprep.subr.mxu0 0.0
  %958 = vmatpush1.msra.mxu0 0.0
  %959 = vmatprep.subr.mxu0 0.0
  %960 = vmatpush1.msra.mxu0 0.0
  %961 = vmatprep.mubr.f32.mxu0 0.0
  %962 = vmatmul.mubr.f32.gmra.mrb[0].mxu0 %v895
  %v963 = vpop.f32.mrb[0].mxu0
  %v964 = vadd.f32 %v863, %v963
  %v965 = vpop.f32.mrb[0].mxu0
  %966 = vdwg.mxu0
  %v967 = vxor.u32 %v964, 2147483648
  %v968 = vmul.f32 %v967, 1.442695
  %v969 = vpow.pop %v968
  %v970 = vadd.f32 %v969, 1.0
  %v971 = vrcp.pop %v970
  %v972 = vmul.f32 1.0, %v971
  %v973 = vtanh.pop %v964
  %v974 = vsel %vm353, %v973, %v972
  %v975 = vmul.f32 %v974, %v778
  %977 = vrot.lane.b32.xlu0 %v974, 64
  %v978 = vpop.permute.xlu0 %977
  %v980 = vmul.f32 %v974, %v978
  %982 = vrot.lane.b32.xlu0 %v980, 32
  %v983 = vpop.permute.xlu0 %982
  %v985 = vadd.f32 %v975, %v983
  %v986 = vtanh.pop %v985
  %988 = vrot.lane.b32.xlu0 %v986, 64
  %v989 = vpop.permute.xlu0 %988
  %v991 = vmul.f32 %v974, %v989
  %994 = vrot.lane.b32.xlu0 %v991, 64
  %v995 = vpop.permute.xlu0 %994
  %v997 = vsel %vm141, %v894, %v995
  %v999 = vsel %vm47, %v997, 0
  %1001 = vmatprep.subr.mxu0 %v355
  %1002 = vmatpush1.msra.mxu0 %v354
  %1003 = vmatprep.subr.mxu0 %v357
  %1004 = vmatpush1.msra.mxu0 %v356
  %1005 = vmatprep.subr.mxu0 %v359
  %1006 = vmatpush1.msra.mxu0 %v358
  %1007 = vmatprep.subr.mxu0 %v361
  %1008 = vmatpush1.msra.mxu0 %v360
  %1009 = vmatprep.subr.mxu0 %v363
  %1010 = vmatpush1.msra.mxu0 %v362
  %1011 = vmatprep.subr.mxu0 %v365
  %1012 = vmatpush1.msra.mxu0 %v364
  %1013 = vmatprep.subr.mxu0 %v367
  %1014 = vmatpush1.msra.mxu0 %v366
  %1015 = vmatprep.subr.mxu0 %v369
  %1016 = vmatpush1.msra.mxu0 %v368
  %1017 = vmatprep.subr.mxu0 0.0
  %1018 = vmatpush1.msra.mxu0 0.0
  %1019 = vmatprep.subr.mxu0 0.0
  %1020 = vmatpush1.msra.mxu0 0.0
  %1021 = vmatprep.subr.mxu0 0.0
  %1022 = vmatpush1.msra.mxu0 0.0
  %1023 = vmatprep.subr.mxu0 0.0
  %1024 = vmatpush1.msra.mxu0 0.0
  %1025 = vmatprep.subr.mxu0 0.0
  %1026 = vmatpush1.msra.mxu0 0.0
  %1027 = vmatprep.subr.mxu0 0.0
  %1028 = vmatpush1.msra.mxu0 0.0
  %1029 = vmatprep.subr.mxu0 0.0
  %1030 = vmatpush1.msra.mxu0 0.0
  %1031 = vmatprep.subr.mxu0 0.0
  %1032 = vmatpush1.msra.mxu0 0.0
  %1033 = vmatprep.subr.mxu0 0.0
  %1034 = vmatpush1.msra.mxu0 0.0
  %1035 = vmatprep.subr.mxu0 0.0
  %1036 = vmatpush1.msra.mxu0 0.0
  %1037 = vmatprep.subr.mxu0 0.0
  %1038 = vmatpush1.msra.mxu0 0.0
  %1039 = vmatprep.subr.mxu0 0.0
  %1040 = vmatpush1.msra.mxu0 0.0
  %1041 = vmatprep.subr.mxu0 0.0
  %1042 = vmatpush1.msra.mxu0 0.0
  %1043 = vmatprep.subr.mxu0 0.0
  %1044 = vmatpush1.msra.mxu0 0.0
  %1045 = vmatprep.subr.mxu0 0.0
  %1046 = vmatpush1.msra.mxu0 0.0
  %1047 = vmatprep.subr.mxu0 0.0
  %1048 = vmatpush1.msra.mxu0 0.0
  %1049 = vmatprep.subr.mxu0 0.0
  %1050 = vmatpush1.msra.mxu0 0.0
  %1051 = vmatprep.subr.mxu0 0.0
  %1052 = vmatpush1.msra.mxu0 0.0
  %1053 = vmatprep.subr.mxu0 0.0
  %1054 = vmatpush1.msra.mxu0 0.0
  %1055 = vmatprep.subr.mxu0 0.0
  %1056 = vmatpush1.msra.mxu0 0.0
  %1057 = vmatprep.subr.mxu0 0.0
  %1058 = vmatpush1.msra.mxu0 0.0
  %1059 = vmatprep.subr.mxu0 0.0
  %1060 = vmatpush1.msra.mxu0 0.0
  %1061 = vmatprep.subr.mxu0 0.0
  %1062 = vmatpush1.msra.mxu0 0.0
  %1063 = vmatprep.subr.mxu0 0.0
  %1064 = vmatpush1.msra.mxu0 0.0
  %1065 = vmatprep.mubr.f32.mxu0 0.0
  %1066 = vmatmul.mubr.f32.gmra.mrb[0].mxu0 %v999
  %v1067 = vpop.f32.mrb[0].mxu0
  %v1068 = vadd.f32 0.0, %v1067
  %v1069 = vpop.f32.mrb[0].mxu0
  %v1070 = vadd.f32 0.0, %v1069
  %1071 = vdwg.mxu0
  %v1072 = vadd.f32 %v248, %v346
  %v1073 = vadd.f32 %v1072, %v1068
  %v1074 = vxor.u32 %v1073, 2147483648
  %v1075 = vmul.f32 %v1074, 1.442695
  %v1076 = vpow.pop %v1075
  %v1077 = vadd.f32 %v1076, 1.0
  %v1078 = vrcp.pop %v1077
  %v1079 = vmul.f32 1.0, %v1078
  %v1080 = vtanh.pop %v1073
  %v1081 = vsel %vm353, %v1080, %v1079
  %v1082 = vmul.f32 %v1081, %v885
  %1084 = vrot.lane.b32.xlu0 %v1081, 64
  %v1085 = vpop.permute.xlu0 %1084
  %v1087 = vmul.f32 %v1081, %v1085
  %1089 = vrot.lane.b32.xlu0 %v1087, 32
  %v1090 = vpop.permute.xlu0 %1089
  %v1092 = vadd.f32 %v1082, %v1090
  %v1093 = vtanh.pop %v1092
  %1095 = vrot.lane.b32.xlu0 %v1093, 64
  %v1096 = vpop.permute.xlu0 %1095
  %v1098 = vmul.f32 %v1081, %v1096
  %1100 = vrot.lane.b32.xlu0 %v1098, 32
  %v1101 = vpop.permute.xlu0 %1100
  %v1102 = vsel %vm141, %v1101, 0
  %1104 = vmatprep.subr.mxu0 0.0
  %1105 = vmatpush1.msra.mxu0 %v370
  %1106 = vmatprep.subr.mxu0 0.0
  %1107 = vmatpush1.msra.mxu0 %v371
  %1108 = vmatprep.subr.mxu0 0.0
  %1109 = vmatpush1.msra.mxu0 %v372
  %1110 = vmatprep.subr.mxu0 0.0
  %1111 = vmatpush1.msra.mxu0 %v373
  %1112 = vmatprep.subr.mxu0 0.0
  %1113 = vmatpush1.msra.mxu0 0.0
  %1114 = vmatprep.subr.mxu0 0.0
  %1115 = vmatpush1.msra.mxu0 0.0
  %1116 = vmatprep.subr.mxu0 0.0
  %1117 = vmatpush1.msra.mxu0 0.0
  %1118 = vmatprep.subr.mxu0 0.0
  %1119 = vmatpush1.msra.mxu0 0.0
  %1120 = vmatprep.subr.mxu0 0.0
  %1121 = vmatpush1.msra.mxu0 0.0
  %1122 = vmatprep.subr.mxu0 0.0
  %1123 = vmatpush1.msra.mxu0 0.0
  %1124 = vmatprep.subr.mxu0 0.0
  %1125 = vmatpush1.msra.mxu0 0.0
  %1126 = vmatprep.subr.mxu0 0.0
  %1127 = vmatpush1.msra.mxu0 0.0
  %1128 = vmatprep.subr.mxu0 0.0
  %1129 = vmatpush1.msra.mxu0 0.0
  %1130 = vmatprep.subr.mxu0 0.0
  %1131 = vmatpush1.msra.mxu0 0.0
  %1132 = vmatprep.subr.mxu0 0.0
  %1133 = vmatpush1.msra.mxu0 0.0
  %1134 = vmatprep.subr.mxu0 0.0
  %1135 = vmatpush1.msra.mxu0 0.0
  %1136 = vmatprep.subr.mxu0 0.0
  %1137 = vmatpush1.msra.mxu0 0.0
  %1138 = vmatprep.subr.mxu0 0.0
  %1139 = vmatpush1.msra.mxu0 0.0
  %1140 = vmatprep.subr.mxu0 0.0
  %1141 = vmatpush1.msra.mxu0 0.0
  %1142 = vmatprep.subr.mxu0 0.0
  %1143 = vmatpush1.msra.mxu0 0.0
  %1144 = vmatprep.subr.mxu0 0.0
  %1145 = vmatpush1.msra.mxu0 0.0
  %1146 = vmatprep.subr.mxu0 0.0
  %1147 = vmatpush1.msra.mxu0 0.0
  %1148 = vmatprep.subr.mxu0 0.0
  %1149 = vmatpush1.msra.mxu0 0.0
  %1150 = vmatprep.subr.mxu0 0.0
  %1151 = vmatpush1.msra.mxu0 0.0
  %1152 = vmatprep.subr.mxu0 0.0
  %1153 = vmatpush1.msra.mxu0 0.0
  %1154 = vmatprep.subr.mxu0 0.0
  %1155 = vmatpush1.msra.mxu0 0.0
  %1156 = vmatprep.subr.mxu0 0.0
  %1157 = vmatpush1.msra.mxu0 0.0
  %1158 = vmatprep.subr.mxu0 0.0
  %1159 = vmatpush1.msra.mxu0 0.0
  %1160 = vmatprep.subr.mxu0 0.0
  %1161 = vmatpush1.msra.mxu0 0.0
  %1162 = vmatprep.subr.mxu0 0.0
  %1163 = vmatpush1.msra.mxu0 0.0
  %1164 = vmatprep.subr.mxu0 0.0
  %1165 = vmatpush1.msra.mxu0 0.0
  %1166 = vmatprep.subr.mxu0 0.0
  %1167 = vmatpush1.msra.mxu0 0.0
  %1168 = vmatprep.mubr.f32.mxu0 0.0
  %1169 = vmatmul.mubr.f32.gmra.mrb[0].mxu0 %v1102
  %v1170 = vpop.f32.mrb[0].mxu0
  %v1171 = vadd.f32 %v1070, %v1170
  %v1172 = vpop.f32.mrb[0].mxu0
  %1173 = vdwg.mxu0
  %v1174 = vxor.u32 %v1171, 2147483648
  %v1175 = vmul.f32 %v1174, 1.442695
  %v1176 = vpow.pop %v1175
  %v1177 = vadd.f32 %v1176, 1.0
  %v1178 = vrcp.pop %v1177
  %v1179 = vmul.f32 1.0, %v1178
  %v1180 = vtanh.pop %v1171
  %v1181 = vsel %vm353, %v1180, %v1179
  %v1182 = vmul.f32 %v1181, %v985
  %1184 = vrot.lane.b32.xlu0 %v1181, 64
  %v1185 = vpop.permute.xlu0 %1184
  %v1187 = vmul.f32 %v1181, %v1185
  %1189 = vrot.lane.b32.xlu0 %v1187, 32
  %v1190 = vpop.permute.xlu0 %1189
  %v1192 = vadd.f32 %v1182, %v1190
  %v1193 = vtanh.pop %v1192
  %1195 = vrot.lane.b32.xlu0 %v1193, 64
  %v1196 = vpop.permute.xlu0 %1195
  %v1198 = vmul.f32 %v1181, %v1196
  %1201 = vrot.lane.b32.xlu0 %v1198, 64
  %v1202 = vpop.permute.xlu0 %1201
  %v1204 = vsel %vm141, %v1101, %v1202
  %v1206 = vsel %vm47, %v1204, 0
  %1208 = vmatprep.subr.mxu0 %v355
  %1209 = vmatpush1.msra.mxu0 %v354
  %1210 = vmatprep.subr.mxu0 %v357
  %1211 = vmatpush1.msra.mxu0 %v356
  %1212 = vmatprep.subr.mxu0 %v359
  %1213 = vmatpush1.msra.mxu0 %v358
  %1214 = vmatprep.subr.mxu0 %v361
  %1215 = vmatpush1.msra.mxu0 %v360
  %1216 = vmatprep.subr.mxu0 %v363
  %1217 = vmatpush1.msra.mxu0 %v362
  %1218 = vmatprep.subr.mxu0 %v365
  %1219 = vmatpush1.msra.mxu0 %v364
  %1220 = vmatprep.subr.mxu0 %v367
  %1221 = vmatpush1.msra.mxu0 %v366
  %1222 = vmatprep.subr.mxu0 %v369
  %1223 = vmatpush1.msra.mxu0 %v368
  %1224 = vmatprep.subr.mxu0 0.0
  %1225 = vmatpush1.msra.mxu0 0.0
  %1226 = vmatprep.subr.mxu0 0.0
  %1227 = vmatpush1.msra.mxu0 0.0
  %1228 = vmatprep.subr.mxu0 0.0
  %1229 = vmatpush1.msra.mxu0 0.0
  %1230 = vmatprep.subr.mxu0 0.0
  %1231 = vmatpush1.msra.mxu0 0.0
  %1232 = vmatprep.subr.mxu0 0.0
  %1233 = vmatpush1.msra.mxu0 0.0
  %1234 = vmatprep.subr.mxu0 0.0
  %1235 = vmatpush1.msra.mxu0 0.0
  %1236 = vmatprep.subr.mxu0 0.0
  %1237 = vmatpush1.msra.mxu0 0.0
  %1238 = vmatprep.subr.mxu0 0.0
  %1239 = vmatpush1.msra.mxu0 0.0
  %1240 = vmatprep.subr.mxu0 0.0
  %1241 = vmatpush1.msra.mxu0 0.0
  %1242 = vmatprep.subr.mxu0 0.0
  %1243 = vmatpush1.msra.mxu0 0.0
  %1244 = vmatprep.subr.mxu0 0.0
  %1245 = vmatpush1.msra.mxu0 0.0
  %1246 = vmatprep.subr.mxu0 0.0
  %1247 = vmatpush1.msra.mxu0 0.0
  %1248 = vmatprep.subr.mxu0 0.0
  %1249 = vmatpush1.msra.mxu0 0.0
  %1250 = vmatprep.subr.mxu0 0.0
  %1251 = vmatpush1.msra.mxu0 0.0
  %1252 = vmatprep.subr.mxu0 0.0
  %1253 = vmatpush1.msra.mxu0 0.0
  %1254 = vmatprep.subr.mxu0 0.0
  %1255 = vmatpush1.msra.mxu0 0.0
  %1256 = vmatprep.subr.mxu0 0.0
  %1257 = vmatpush1.msra.mxu0 0.0
  %1258 = vmatprep.subr.mxu0 0.0
  %1259 = vmatpush1.msra.mxu0 0.0
  %1260 = vmatprep.subr.mxu0 0.0
  %1261 = vmatpush1.msra.mxu0 0.0
  %1262 = vmatprep.subr.mxu0 0.0
  %1263 = vmatpush1.msra.mxu0 0.0
  %1264 = vmatprep.subr.mxu0 0.0
  %1265 = vmatpush1.msra.mxu0 0.0
  %1266 = vmatprep.subr.mxu0 0.0
  %1267 = vmatpush1.msra.mxu0 0.0
  %1268 = vmatprep.subr.mxu0 0.0
  %1269 = vmatpush1.msra.mxu0 0.0
  %1270 = vmatprep.subr.mxu0 0.0
  %1271 = vmatpush1.msra.mxu0 0.0
  %1272 = vmatprep.mubr.f32.mxu0 0.0
  %1273 = vmatmul.mubr.f32.gmra.mrb[0].mxu0 %v1206
  %v1274 = vpop.f32.mrb[0].mxu0
  %v1275 = vadd.f32 0.0, %v1274
  %v1276 = vpop.f32.mrb[0].mxu0
  %v1277 = vadd.f32 0.0, %v1276
  %1278 = vdwg.mxu0
  %v1279 = vadd.f32 %v253, %v346
  %v1280 = vadd.f32 %v1279, %v1275
  %v1281 = vxor.u32 %v1280, 2147483648
  %v1282 = vmul.f32 %v1281, 1.442695
  %v1283 = vpow.pop %v1282
  %v1284 = vadd.f32 %v1283, 1.0
  %v1285 = vrcp.pop %v1284
  %v1286 = vmul.f32 1.0, %v1285
  %v1287 = vtanh.pop %v1280
  %v1288 = vsel %vm353, %v1287, %v1286
  %v1289 = vmul.f32 %v1288, %v1092
  %1291 = vrot.lane.b32.xlu0 %v1288, 64
  %v1292 = vpop.permute.xlu0 %1291
  %v1294 = vmul.f32 %v1288, %v1292
  %1296 = vrot.lane.b32.xlu0 %v1294, 32
  %v1297 = vpop.permute.xlu0 %1296
  %v1299 = vadd.f32 %v1289, %v1297
  %v1300 = vtanh.pop %v1299
  %1302 = vrot.lane.b32.xlu0 %v1300, 64
  %v1303 = vpop.permute.xlu0 %1302
  %v1305 = vmul.f32 %v1288, %v1303
  %1307 = vrot.lane.b32.xlu0 %v1305, 32
  %v1308 = vpop.permute.xlu0 %1307
  %v1309 = vsel %vm141, %v1308, 0
  %1311 = vmatprep.subr.mxu0 0.0
  %1312 = vmatpush1.msra.mxu0 %v370
  %1313 = vmatprep.subr.mxu0 0.0
  %1314 = vmatpush1.msra.mxu0 %v371
  %1315 = vmatprep.subr.mxu0 0.0
  %1316 = vmatpush1.msra.mxu0 %v372
  %1317 = vmatprep.subr.mxu0 0.0
  %1318 = vmatpush1.msra.mxu0 %v373
  %1319 = vmatprep.subr.mxu0 0.0
  %1320 = vmatpush1.msra.mxu0 0.0
  %1321 = vmatprep.subr.mxu0 0.0
  %1322 = vmatpush1.msra.mxu0 0.0
  %1323 = vmatprep.subr.mxu0 0.0
  %1324 = vmatpush1.msra.mxu0 0.0
  %1325 = vmatprep.subr.mxu0 0.0
  %1326 = vmatpush1.msra.mxu0 0.0
  %1327 = vmatprep.subr.mxu0 0.0
  %1328 = vmatpush1.msra.mxu0 0.0
  %1329 = vmatprep.subr.mxu0 0.0
  %1330 = vmatpush1.msra.mxu0 0.0
  %1331 = vmatprep.subr.mxu0 0.0
  %1332 = vmatpush1.msra.mxu0 0.0
  %1333 = vmatprep.subr.mxu0 0.0
  %1334 = vmatpush1.msra.mxu0 0.0
  %1335 = vmatprep.subr.mxu0 0.0
  %1336 = vmatpush1.msra.mxu0 0.0
  %1337 = vmatprep.subr.mxu0 0.0
  %1338 = vmatpush1.msra.mxu0 0.0
  %1339 = vmatprep.subr.mxu0 0.0
  %1340 = vmatpush1.msra.mxu0 0.0
  %1341 = vmatprep.subr.mxu0 0.0
  %1342 = vmatpush1.msra.mxu0 0.0
  %1343 = vmatprep.subr.mxu0 0.0
  %1344 = vmatpush1.msra.mxu0 0.0
  %1345 = vmatprep.subr.mxu0 0.0
  %1346 = vmatpush1.msra.mxu0 0.0
  %1347 = vmatprep.subr.mxu0 0.0
  %1348 = vmatpush1.msra.mxu0 0.0
  %1349 = vmatprep.subr.mxu0 0.0
  %1350 = vmatpush1.msra.mxu0 0.0
  %1351 = vmatprep.subr.mxu0 0.0
  %1352 = vmatpush1.msra.mxu0 0.0
  %1353 = vmatprep.subr.mxu0 0.0
  %1354 = vmatpush1.msra.mxu0 0.0
  %1355 = vmatprep.subr.mxu0 0.0
  %1356 = vmatpush1.msra.mxu0 0.0
  %1357 = vmatprep.subr.mxu0 0.0
  %1358 = vmatpush1.msra.mxu0 0.0
  %1359 = vmatprep.subr.mxu0 0.0
  %1360 = vmatpush1.msra.mxu0 0.0
  %1361 = vmatprep.subr.mxu0 0.0
  %1362 = vmatpush1.msra.mxu0 0.0
  %1363 = vmatprep.subr.mxu0 0.0
  %1364 = vmatpush1.msra.mxu0 0.0
  %1365 = vmatprep.subr.mxu0 0.0
  %1366 = vmatpush1.msra.mxu0 0.0
  %1367 = vmatprep.subr.mxu0 0.0
  %1368 = vmatpush1.msra.mxu0 0.0
  %1369 = vmatprep.subr.mxu0 0.0
  %1370 = vmatpush1.msra.mxu0 0.0
  %1371 = vmatprep.subr.mxu0 0.0
  %1372 = vmatpush1.msra.mxu0 0.0
  %1373 = vmatprep.subr.mxu0 0.0
  %1374 = vmatpush1.msra.mxu0 0.0
  %1375 = vmatprep.mubr.f32.mxu0 0.0
  %1376 = vmatmul.mubr.f32.gmra.mrb[0].mxu0 %v1309
  %v1377 = vpop.f32.mrb[0].mxu0
  %v1378 = vadd.f32 %v1277, %v1377
  %v1379 = vpop.f32.mrb[0].mxu0
  %1380 = vdwg.mxu0
  %v1381 = vxor.u32 %v1378, 2147483648
  %v1382 = vmul.f32 %v1381, 1.442695
  %v1383 = vpow.pop %v1382
  %v1384 = vadd.f32 %v1383, 1.0
  %v1385 = vrcp.pop %v1384
  %v1386 = vmul.f32 1.0, %v1385
  %v1387 = vtanh.pop %v1378
  %v1388 = vsel %vm353, %v1387, %v1386
  %v1389 = vmul.f32 %v1388, %v1192
  %1391 = vrot.lane.b32.xlu0 %v1388, 64
  %v1392 = vpop.permute.xlu0 %1391
  %v1394 = vmul.f32 %v1388, %v1392
  %1396 = vrot.lane.b32.xlu0 %v1394, 32
  %v1397 = vpop.permute.xlu0 %1396
  %v1399 = vadd.f32 %v1389, %v1397
  %v1400 = vtanh.pop %v1399
  %1402 = vrot.lane.b32.xlu0 %v1400, 64
  %v1403 = vpop.permute.xlu0 %1402
  %v1405 = vmul.f32 %v1388, %v1403
  %1408 = vrot.lane.b32.xlu0 %v1405, 64
  %v1409 = vpop.permute.xlu0 %1408
  %v1411 = vsel %vm141, %v1308, %v1409
  %v1413 = vsel %vm47, %v1411, 0
  %1415 = vmatprep.subr.mxu0 %v355
  %1416 = vmatpush1.msra.mxu0 %v354
  %1417 = vmatprep.subr.mxu0 %v357
  %1418 = vmatpush1.msra.mxu0 %v356
  %1419 = vmatprep.subr.mxu0 %v359
  %1420 = vmatpush1.msra.mxu0 %v358
  %1421 = vmatprep.subr.mxu0 %v361
  %1422 = vmatpush1.msra.mxu0 %v360
  %1423 = vmatprep.subr.mxu0 %v363
  %1424 = vmatpush1.msra.mxu0 %v362
  %1425 = vmatprep.subr.mxu0 %v365
  %1426 = vmatpush1.msra.mxu0 %v364
  %1427 = vmatprep.subr.mxu0 %v367
  %1428 = vmatpush1.msra.mxu0 %v366
  %1429 = vmatprep.subr.mxu0 %v369
  %1430 = vmatpush1.msra.mxu0 %v368
  %1431 = vmatprep.subr.mxu0 0.0
  %1432 = vmatpush1.msra.mxu0 0.0
  %1433 = vmatprep.subr.mxu0 0.0
  %1434 = vmatpush1.msra.mxu0 0.0
  %1435 = vmatprep.subr.mxu0 0.0
  %1436 = vmatpush1.msra.mxu0 0.0
  %1437 = vmatprep.subr.mxu0 0.0
  %1438 = vmatpush1.msra.mxu0 0.0
  %1439 = vmatprep.subr.mxu0 0.0
  %1440 = vmatpush1.msra.mxu0 0.0
  %1441 = vmatprep.subr.mxu0 0.0
  %1442 = vmatpush1.msra.mxu0 0.0
  %1443 = vmatprep.subr.mxu0 0.0
  %1444 = vmatpush1.msra.mxu0 0.0
  %1445 = vmatprep.subr.mxu0 0.0
  %1446 = vmatpush1.msra.mxu0 0.0
  %1447 = vmatprep.subr.mxu0 0.0
  %1448 = vmatpush1.msra.mxu0 0.0
  %1449 = vmatprep.subr.mxu0 0.0
  %1450 = vmatpush1.msra.mxu0 0.0
  %1451 = vmatprep.subr.mxu0 0.0
  %1452 = vmatpush1.msra.mxu0 0.0
  %1453 = vmatprep.subr.mxu0 0.0
  %1454 = vmatpush1.msra.mxu0 0.0
  %1455 = vmatprep.subr.mxu0 0.0
  %1456 = vmatpush1.msra.mxu0 0.0
  %1457 = vmatprep.subr.mxu0 0.0
  %1458 = vmatpush1.msra.mxu0 0.0
  %1459 = vmatprep.subr.mxu0 0.0
  %1460 = vmatpush1.msra.mxu0 0.0
  %1461 = vmatprep.subr.mxu0 0.0
  %1462 = vmatpush1.msra.mxu0 0.0
  %1463 = vmatprep.subr.mxu0 0.0
  %1464 = vmatpush1.msra.mxu0 0.0
  %1465 = vmatprep.subr.mxu0 0.0
  %1466 = vmatpush1.msra.mxu0 0.0
  %1467 = vmatprep.subr.mxu0 0.0
  %1468 = vmatpush1.msra.mxu0 0.0
  %1469 = vmatprep.subr.mxu0 0.0
  %1470 = vmatpush1.msra.mxu0 0.0
  %1471 = vmatprep.subr.mxu0 0.0
  %1472 = vmatpush1.msra.mxu0 0.0
  %1473 = vmatprep.subr.mxu0 0.0
  %1474 = vmatpush1.msra.mxu0 0.0
  %1475 = vmatprep.subr.mxu0 0.0
  %1476 = vmatpush1.msra.mxu0 0.0
  %1477 = vmatprep.subr.mxu0 0.0
  %1478 = vmatpush1.msra.mxu0 0.0
  %1479 = vmatprep.mubr.f32.mxu0 0.0
  %1480 = vmatmul.mubr.f32.gmra.mrb[0].mxu0 %v1413
  %v1481 = vpop.f32.mrb[0].mxu0
  %v1482 = vadd.f32 0.0, %v1481
  %v1483 = vpop.f32.mrb[0].mxu0
  %v1484 = vadd.f32 0.0, %v1483
  %1485 = vdwg.mxu0
  %v1486 = vadd.f32 %v258, %v346
  %v1487 = vadd.f32 %v1486, %v1482
  %v1488 = vxor.u32 %v1487, 2147483648
  %v1489 = vmul.f32 %v1488, 1.442695
  %v1490 = vpow.pop %v1489
  %v1491 = vadd.f32 %v1490, 1.0
  %v1492 = vrcp.pop %v1491
  %v1493 = vmul.f32 1.0, %v1492
  %v1494 = vtanh.pop %v1487
  %v1495 = vsel %vm353, %v1494, %v1493
  %v1496 = vmul.f32 %v1495, %v1299
  %1498 = vrot.lane.b32.xlu0 %v1495, 64
  %v1499 = vpop.permute.xlu0 %1498
  %v1501 = vmul.f32 %v1495, %v1499
  %1503 = vrot.lane.b32.xlu0 %v1501, 32
  %v1504 = vpop.permute.xlu0 %1503
  %v1506 = vadd.f32 %v1496, %v1504
  %v1507 = vtanh.pop %v1506
  %1509 = vrot.lane.b32.xlu0 %v1507, 64
  %v1510 = vpop.permute.xlu0 %1509
  %v1512 = vmul.f32 %v1495, %v1510
  %1514 = vrot.lane.b32.xlu0 %v1512, 32
  %v1515 = vpop.permute.xlu0 %1514
  %v1516 = vsel %vm141, %v1515, 0
  %1518 = vmatprep.subr.mxu0 0.0
  %1519 = vmatpush1.msra.mxu0 %v370
  %1520 = vmatprep.subr.mxu0 0.0
  %1521 = vmatpush1.msra.mxu0 %v371
  %1522 = vmatprep.subr.mxu0 0.0
  %1523 = vmatpush1.msra.mxu0 %v372
  %1524 = vmatprep.subr.mxu0 0.0
  %1525 = vmatpush1.msra.mxu0 %v373
  %1526 = vmatprep.subr.mxu0 0.0
  %1527 = vmatpush1.msra.mxu0 0.0
  %1528 = vmatprep.subr.mxu0 0.0
  %1529 = vmatpush1.msra.mxu0 0.0
  %1530 = vmatprep.subr.mxu0 0.0
  %1531 = vmatpush1.msra.mxu0 0.0
  %1532 = vmatprep.subr.mxu0 0.0
  %1533 = vmatpush1.msra.mxu0 0.0
  %1534 = vmatprep.subr.mxu0 0.0
  %1535 = vmatpush1.msra.mxu0 0.0
  %1536 = vmatprep.subr.mxu0 0.0
  %1537 = vmatpush1.msra.mxu0 0.0
  %1538 = vmatprep.subr.mxu0 0.0
  %1539 = vmatpush1.msra.mxu0 0.0
  %1540 = vmatprep.subr.mxu0 0.0
  %1541 = vmatpush1.msra.mxu0 0.0
  %1542 = vmatprep.subr.mxu0 0.0
  %1543 = vmatpush1.msra.mxu0 0.0
  %1544 = vmatprep.subr.mxu0 0.0
  %1545 = vmatpush1.msra.mxu0 0.0
  %1546 = vmatprep.subr.mxu0 0.0
  %1547 = vmatpush1.msra.mxu0 0.0
  %1548 = vmatprep.subr.mxu0 0.0
  %1549 = vmatpush1.msra.mxu0 0.0
  %1550 = vmatprep.subr.mxu0 0.0
  %1551 = vmatpush1.msra.mxu0 0.0
  %1552 = vmatprep.subr.mxu0 0.0
  %1553 = vmatpush1.msra.mxu0 0.0
  %1554 = vmatprep.subr.mxu0 0.0
  %1555 = vmatpush1.msra.mxu0 0.0
  %1556 = vmatprep.subr.mxu0 0.0
  %1557 = vmatpush1.msra.mxu0 0.0
  %1558 = vmatprep.subr.mxu0 0.0
  %1559 = vmatpush1.msra.mxu0 0.0
  %1560 = vmatprep.subr.mxu0 0.0
  %1561 = vmatpush1.msra.mxu0 0.0
  %1562 = vmatprep.subr.mxu0 0.0
  %1563 = vmatpush1.msra.mxu0 0.0
  %1564 = vmatprep.subr.mxu0 0.0
  %1565 = vmatpush1.msra.mxu0 0.0
  %1566 = vmatprep.subr.mxu0 0.0
  %1567 = vmatpush1.msra.mxu0 0.0
  %1568 = vmatprep.subr.mxu0 0.0
  %1569 = vmatpush1.msra.mxu0 0.0
  %1570 = vmatprep.subr.mxu0 0.0
  %1571 = vmatpush1.msra.mxu0 0.0
  %1572 = vmatprep.subr.mxu0 0.0
  %1573 = vmatpush1.msra.mxu0 0.0
  %1574 = vmatprep.subr.mxu0 0.0
  %1575 = vmatpush1.msra.mxu0 0.0
  %1576 = vmatprep.subr.mxu0 0.0
  %1577 = vmatpush1.msra.mxu0 0.0
  %1578 = vmatprep.subr.mxu0 0.0
  %1579 = vmatpush1.msra.mxu0 0.0
  %1580 = vmatprep.subr.mxu0 0.0
  %1581 = vmatpush1.msra.mxu0 0.0
  %1582 = vmatprep.mubr.f32.mxu0 0.0
  %1583 = vmatmul.mubr.f32.gmra.mrb[0].mxu0 %v1516
  %v1584 = vpop.f32.mrb[0].mxu0
  %v1585 = vadd.f32 %v1484, %v1584
  %v1586 = vpop.f32.mrb[0].mxu0
  %1587 = vdwg.mxu0
  %v1588 = vxor.u32 %v1585, 2147483648
  %v1589 = vmul.f32 %v1588, 1.442695
  %v1590 = vpow.pop %v1589
  %v1591 = vadd.f32 %v1590, 1.0
  %v1592 = vrcp.pop %v1591
  %v1593 = vmul.f32 1.0, %v1592
  %v1594 = vtanh.pop %v1585
  %v1595 = vsel %vm353, %v1594, %v1593
  %v1596 = vmul.f32 %v1595, %v1399
  %1598 = vrot.lane.b32.xlu0 %v1595, 64
  %v1599 = vpop.permute.xlu0 %1598
  %v1601 = vmul.f32 %v1595, %v1599
  %1603 = vrot.lane.b32.xlu0 %v1601, 32
  %v1604 = vpop.permute.xlu0 %1603
  %v1606 = vadd.f32 %v1596, %v1604
  %v1607 = vtanh.pop %v1606
  %1609 = vrot.lane.b32.xlu0 %v1607, 64
  %v1610 = vpop.permute.xlu0 %1609
  %v1612 = vmul.f32 %v1595, %v1610
  %1615 = vrot.lane.b32.xlu0 %v1612, 64
  %v1616 = vpop.permute.xlu0 %1615
  %v1618 = vsel %vm141, %v1515, %v1616
  %v1620 = vsel %vm47, %v1618, 0
  %1622 = vmatprep.subr.mxu0 %v355
  %1623 = vmatpush1.msra.mxu0 %v354
  %1624 = vmatprep.subr.mxu0 %v357
  %1625 = vmatpush1.msra.mxu0 %v356
  %1626 = vmatprep.subr.mxu0 %v359
  %1627 = vmatpush1.msra.mxu0 %v358
  %1628 = vmatprep.subr.mxu0 %v361
  %1629 = vmatpush1.msra.mxu0 %v360
  %1630 = vmatprep.subr.mxu0 %v363
  %1631 = vmatpush1.msra.mxu0 %v362
  %1632 = vmatprep.subr.mxu0 %v365
  %1633 = vmatpush1.msra.mxu0 %v364
  %1634 = vmatprep.subr.mxu0 %v367
  %1635 = vmatpush1.msra.mxu0 %v366
  %1636 = vmatprep.subr.mxu0 %v369
  %1637 = vmatpush1.msra.mxu0 %v368
  %1638 = vmatprep.subr.mxu0 0.0
  %1639 = vmatpush1.msra.mxu0 0.0
  %1640 = vmatprep.subr.mxu0 0.0
  %1641 = vmatpush1.msra.mxu0 0.0
  %1642 = vmatprep.subr.mxu0 0.0
  %1643 = vmatpush1.msra.mxu0 0.0
  %1644 = vmatprep.subr.mxu0 0.0
  %1645 = vmatpush1.msra.mxu0 0.0
  %1646 = vmatprep.subr.mxu0 0.0
  %1647 = vmatpush1.msra.mxu0 0.0
  %1648 = vmatprep.subr.mxu0 0.0
  %1649 = vmatpush1.msra.mxu0 0.0
  %1650 = vmatprep.subr.mxu0 0.0
  %1651 = vmatpush1.msra.mxu0 0.0
  %1652 = vmatprep.subr.mxu0 0.0
  %1653 = vmatpush1.msra.mxu0 0.0
  %1654 = vmatprep.subr.mxu0 0.0
  %1655 = vmatpush1.msra.mxu0 0.0
  %1656 = vmatprep.subr.mxu0 0.0
  %1657 = vmatpush1.msra.mxu0 0.0
  %1658 = vmatprep.subr.mxu0 0.0
  %1659 = vmatpush1.msra.mxu0 0.0
  %1660 = vmatprep.subr.mxu0 0.0
  %1661 = vmatpush1.msra.mxu0 0.0
  %1662 = vmatprep.subr.mxu0 0.0
  %1663 = vmatpush1.msra.mxu0 0.0
  %1664 = vmatprep.subr.mxu0 0.0
  %1665 = vmatpush1.msra.mxu0 0.0
  %1666 = vmatprep.subr.mxu0 0.0
  %1667 = vmatpush1.msra.mxu0 0.0
  %1668 = vmatprep.subr.mxu0 0.0
  %1669 = vmatpush1.msra.mxu0 0.0
  %1670 = vmatprep.subr.mxu0 0.0
  %1671 = vmatpush1.msra.mxu0 0.0
  %1672 = vmatprep.subr.mxu0 0.0
  %1673 = vmatpush1.msra.mxu0 0.0
  %1674 = vmatprep.subr.mxu0 0.0
  %1675 = vmatpush1.msra.mxu0 0.0
  %1676 = vmatprep.subr.mxu0 0.0
  %1677 = vmatpush1.msra.mxu0 0.0
  %1678 = vmatprep.subr.mxu0 0.0
  %1679 = vmatpush1.msra.mxu0 0.0
  %1680 = vmatprep.subr.mxu0 0.0
  %1681 = vmatpush1.msra.mxu0 0.0
  %1682 = vmatprep.subr.mxu0 0.0
  %1683 = vmatpush1.msra.mxu0 0.0
  %1684 = vmatprep.subr.mxu0 0.0
  %1685 = vmatpush1.msra.mxu0 0.0
  %1686 = vmatprep.mubr.f32.mxu0 0.0
  %1687 = vmatmul.mubr.f32.gmra.mrb[0].mxu0 %v1620
  %v1688 = vpop.f32.mrb[0].mxu0
  %v1689 = vadd.f32 0.0, %v1688
  %v1690 = vpop.f32.mrb[0].mxu0
  %v1691 = vadd.f32 0.0, %v1690
  %1692 = vdwg.mxu0
  %v1693 = vadd.f32 %v263, %v346
  %v1694 = vadd.f32 %v1693, %v1689
  %v1695 = vxor.u32 %v1694, 2147483648
  %v1696 = vmul.f32 %v1695, 1.442695
  %v1697 = vpow.pop %v1696
  %v1698 = vadd.f32 %v1697, 1.0
  %v1699 = vrcp.pop %v1698
  %v1700 = vmul.f32 1.0, %v1699
  %v1701 = vtanh.pop %v1694
  %v1702 = vsel %vm353, %v1701, %v1700
  %v1703 = vmul.f32 %v1702, %v1506
  %1705 = vrot.lane.b32.xlu0 %v1702, 64
  %v1706 = vpop.permute.xlu0 %1705
  %v1708 = vmul.f32 %v1702, %v1706
  %1710 = vrot.lane.b32.xlu0 %v1708, 32
  %v1711 = vpop.permute.xlu0 %1710
  %v1713 = vadd.f32 %v1703, %v1711
  %v1714 = vtanh.pop %v1713
  %1716 = vrot.lane.b32.xlu0 %v1714, 64
  %v1717 = vpop.permute.xlu0 %1716
  %v1719 = vmul.f32 %v1702, %v1717
  %1721 = vrot.lane.b32.xlu0 %v1719, 32
  %v1722 = vpop.permute.xlu0 %1721
  %v1723 = vsel %vm141, %v1722, 0
  %1725 = vmatprep.subr.mxu0 0.0
  %1726 = vmatpush1.msra.mxu0 %v370
  %1727 = vmatprep.subr.mxu0 0.0
  %1728 = vmatpush1.msra.mxu0 %v371
  %1729 = vmatprep.subr.mxu0 0.0
  %1730 = vmatpush1.msra.mxu0 %v372
  %1731 = vmatprep.subr.mxu0 0.0
  %1732 = vmatpush1.msra.mxu0 %v373
  %1733 = vmatprep.subr.mxu0 0.0
  %1734 = vmatpush1.msra.mxu0 0.0
  %1735 = vmatprep.subr.mxu0 0.0
  %1736 = vmatpush1.msra.mxu0 0.0
  %1737 = vmatprep.subr.mxu0 0.0
  %1738 = vmatpush1.msra.mxu0 0.0
  %1739 = vmatprep.subr.mxu0 0.0
  %1740 = vmatpush1.msra.mxu0 0.0
  %1741 = vmatprep.subr.mxu0 0.0
  %1742 = vmatpush1.msra.mxu0 0.0
  %1743 = vmatprep.subr.mxu0 0.0
  %1744 = vmatpush1.msra.mxu0 0.0
  %1745 = vmatprep.subr.mxu0 0.0
  %1746 = vmatpush1.msra.mxu0 0.0
  %1747 = vmatprep.subr.mxu0 0.0
  %1748 = vmatpush1.msra.mxu0 0.0
  %1749 = vmatprep.subr.mxu0 0.0
  %1750 = vmatpush1.msra.mxu0 0.0
  %1751 = vmatprep.subr.mxu0 0.0
  %1752 = vmatpush1.msra.mxu0 0.0
  %1753 = vmatprep.subr.mxu0 0.0
  %1754 = vmatpush1.msra.mxu0 0.0
  %1755 = vmatprep.subr.mxu0 0.0
  %1756 = vmatpush1.msra.mxu0 0.0
  %1757 = vmatprep.subr.mxu0 0.0
  %1758 = vmatpush1.msra.mxu0 0.0
  %1759 = vmatprep.subr.mxu0 0.0
  %1760 = vmatpush1.msra.mxu0 0.0
  %1761 = vmatprep.subr.mxu0 0.0
  %1762 = vmatpush1.msra.mxu0 0.0
  %1763 = vmatprep.subr.mxu0 0.0
  %1764 = vmatpush1.msra.mxu0 0.0
  %1765 = vmatprep.subr.mxu0 0.0
  %1766 = vmatpush1.msra.mxu0 0.0
  %1767 = vmatprep.subr.mxu0 0.0
  %1768 = vmatpush1.msra.mxu0 0.0
  %1769 = vmatprep.subr.mxu0 0.0
  %1770 = vmatpush1.msra.mxu0 0.0
  %1771 = vmatprep.subr.mxu0 0.0
  %1772 = vmatpush1.msra.mxu0 0.0
  %1773 = vmatprep.subr.mxu0 0.0
  %1774 = vmatpush1.msra.mxu0 0.0
  %1775 = vmatprep.subr.mxu0 0.0
  %1776 = vmatpush1.msra.mxu0 0.0
  %1777 = vmatprep.subr.mxu0 0.0
  %1778 = vmatpush1.msra.mxu0 0.0
  %1779 = vmatprep.subr.mxu0 0.0
  %1780 = vmatpush1.msra.mxu0 0.0
  %1781 = vmatprep.subr.mxu0 0.0
  %1782 = vmatpush1.msra.mxu0 0.0
  %1783 = vmatprep.subr.mxu0 0.0
  %1784 = vmatpush1.msra.mxu0 0.0
  %1785 = vmatprep.subr.mxu0 0.0
  %1786 = vmatpush1.msra.mxu0 0.0
  %1787 = vmatprep.subr.mxu0 0.0
  %1788 = vmatpush1.msra.mxu0 0.0
  %1789 = vmatprep.mubr.f32.mxu0 0.0
  %1790 = vmatmul.mubr.f32.gmra.mrb[0].mxu0 %v1723
  %v1791 = vpop.f32.mrb[0].mxu0
  %v1792 = vadd.f32 %v1691, %v1791
  %v1793 = vpop.f32.mrb[0].mxu0
  %1794 = vdwg.mxu0
  %v1795 = vxor.u32 %v1792, 2147483648
  %v1796 = vmul.f32 %v1795, 1.442695
  %v1797 = vpow.pop %v1796
  %v1798 = vadd.f32 %v1797, 1.0
  %v1799 = vrcp.pop %v1798
  %v1800 = vmul.f32 1.0, %v1799
  %v1801 = vtanh.pop %v1792
  %v1802 = vsel %vm353, %v1801, %v1800
  %v1803 = vmul.f32 %v1802, %v1606
  %1805 = vrot.lane.b32.xlu0 %v1802, 64
  %v1806 = vpop.permute.xlu0 %1805
  %v1808 = vmul.f32 %v1802, %v1806
  %1810 = vrot.lane.b32.xlu0 %v1808, 32
  %v1811 = vpop.permute.xlu0 %1810
  %v1813 = vadd.f32 %v1803, %v1811
  %v1814 = vtanh.pop %v1813
  %1816 = vrot.lane.b32.xlu0 %v1814, 64
  %v1817 = vpop.permute.xlu0 %1816
  %v1819 = vmul.f32 %v1802, %v1817
  %1822 = vrot.lane.b32.xlu0 %v1819, 64
  %v1823 = vpop.permute.xlu0 %1822
  %v1825 = vsel %vm141, %v1722, %v1823
  %v1827 = vsel %vm47, %v1825, 0
  %1829 = vmatprep.subr.mxu0 %v355
  %1830 = vmatpush1.msra.mxu0 %v354
  %1831 = vmatprep.subr.mxu0 %v357
  %1832 = vmatpush1.msra.mxu0 %v356
  %1833 = vmatprep.subr.mxu0 %v359
  %1834 = vmatpush1.msra.mxu0 %v358
  %1835 = vmatprep.subr.mxu0 %v361
  %1836 = vmatpush1.msra.mxu0 %v360
  %1837 = vmatprep.subr.mxu0 %v363
  %1838 = vmatpush1.msra.mxu0 %v362
  %1839 = vmatprep.subr.mxu0 %v365
  %1840 = vmatpush1.msra.mxu0 %v364
  %1841 = vmatprep.subr.mxu0 %v367
  %1842 = vmatpush1.msra.mxu0 %v366
  %1843 = vmatprep.subr.mxu0 %v369
  %1844 = vmatpush1.msra.mxu0 %v368
  %1845 = vmatprep.subr.mxu0 0.0
  %1846 = vmatpush1.msra.mxu0 0.0
  %1847 = vmatprep.subr.mxu0 0.0
  %1848 = vmatpush1.msra.mxu0 0.0
  %1849 = vmatprep.subr.mxu0 0.0
  %1850 = vmatpush1.msra.mxu0 0.0
  %1851 = vmatprep.subr.mxu0 0.0
  %1852 = vmatpush1.msra.mxu0 0.0
  %1853 = vmatprep.subr.mxu0 0.0
  %1854 = vmatpush1.msra.mxu0 0.0
  %1855 = vmatprep.subr.mxu0 0.0
  %1856 = vmatpush1.msra.mxu0 0.0
  %1857 = vmatprep.subr.mxu0 0.0
  %1858 = vmatpush1.msra.mxu0 0.0
  %1859 = vmatprep.subr.mxu0 0.0
  %1860 = vmatpush1.msra.mxu0 0.0
  %1861 = vmatprep.subr.mxu0 0.0
  %1862 = vmatpush1.msra.mxu0 0.0
  %1863 = vmatprep.subr.mxu0 0.0
  %1864 = vmatpush1.msra.mxu0 0.0
  %1865 = vmatprep.subr.mxu0 0.0
  %1866 = vmatpush1.msra.mxu0 0.0
  %1867 = vmatprep.subr.mxu0 0.0
  %1868 = vmatpush1.msra.mxu0 0.0
  %1869 = vmatprep.subr.mxu0 0.0
  %1870 = vmatpush1.msra.mxu0 0.0
  %1871 = vmatprep.subr.mxu0 0.0
  %1872 = vmatpush1.msra.mxu0 0.0
  %1873 = vmatprep.subr.mxu0 0.0
  %1874 = vmatpush1.msra.mxu0 0.0
  %1875 = vmatprep.subr.mxu0 0.0
  %1876 = vmatpush1.msra.mxu0 0.0
  %1877 = vmatprep.subr.mxu0 0.0
  %1878 = vmatpush1.msra.mxu0 0.0
  %1879 = vmatprep.subr.mxu0 0.0
  %1880 = vmatpush1.msra.mxu0 0.0
  %1881 = vmatprep.subr.mxu0 0.0
  %1882 = vmatpush1.msra.mxu0 0.0
  %1883 = vmatprep.subr.mxu0 0.0
  %1884 = vmatpush1.msra.mxu0 0.0
  %1885 = vmatprep.subr.mxu0 0.0
  %1886 = vmatpush1.msra.mxu0 0.0
  %1887 = vmatprep.subr.mxu0 0.0
  %1888 = vmatpush1.msra.mxu0 0.0
  %1889 = vmatprep.subr.mxu0 0.0
  %1890 = vmatpush1.msra.mxu0 0.0
  %1891 = vmatprep.subr.mxu0 0.0
  %1892 = vmatpush1.msra.mxu0 0.0
  %1893 = vmatprep.mubr.f32.mxu0 0.0
  %1894 = vmatmul.mubr.f32.gmra.mrb[0].mxu0 %v1827
  %v1895 = vpop.f32.mrb[0].mxu0
  %v1896 = vadd.f32 0.0, %v1895
  %v1897 = vpop.f32.mrb[0].mxu0
  %v1898 = vadd.f32 0.0, %v1897
  %1899 = vdwg.mxu0
  %v1900 = vadd.f32 %v268, %v346
  %v1901 = vadd.f32 %v1900, %v1896
  %v1902 = vxor.u32 %v1901, 2147483648
  %v1903 = vmul.f32 %v1902, 1.442695
  %v1904 = vpow.pop %v1903
  %v1905 = vadd.f32 %v1904, 1.0
  %v1906 = vrcp.pop %v1905
  %v1907 = vmul.f32 1.0, %v1906
  %v1908 = vtanh.pop %v1901
  %v1909 = vsel %vm353, %v1908, %v1907
  %v1910 = vmul.f32 %v1909, %v1713
  %1912 = vrot.lane.b32.xlu0 %v1909, 64
  %v1913 = vpop.permute.xlu0 %1912
  %v1915 = vmul.f32 %v1909, %v1913
  %1917 = vrot.lane.b32.xlu0 %v1915, 32
  %v1918 = vpop.permute.xlu0 %1917
  %v1920 = vadd.f32 %v1910, %v1918
  %v1921 = vtanh.pop %v1920
  %1923 = vrot.lane.b32.xlu0 %v1921, 64
  %v1924 = vpop.permute.xlu0 %1923
  %v1926 = vmul.f32 %v1909, %v1924
  %1928 = vrot.lane.b32.xlu0 %v1926, 32
  %v1929 = vpop.permute.xlu0 %1928
  %v1930 = vsel %vm141, %v1929, 0
  %1932 = vmatprep.subr.mxu0 0.0
  %1933 = vmatpush1.msra.mxu0 %v370
  %1934 = vmatprep.subr.mxu0 0.0
  %1935 = vmatpush1.msra.mxu0 %v371
  %1936 = vmatprep.subr.mxu0 0.0
  %1937 = vmatpush1.msra.mxu0 %v372
  %1938 = vmatprep.subr.mxu0 0.0
  %1939 = vmatpush1.msra.mxu0 %v373
  %1940 = vmatprep.subr.mxu0 0.0
  %1941 = vmatpush1.msra.mxu0 0.0
  %1942 = vmatprep.subr.mxu0 0.0
  %1943 = vmatpush1.msra.mxu0 0.0
  %1944 = vmatprep.subr.mxu0 0.0
  %1945 = vmatpush1.msra.mxu0 0.0
  %1946 = vmatprep.subr.mxu0 0.0
  %1947 = vmatpush1.msra.mxu0 0.0
  %1948 = vmatprep.subr.mxu0 0.0
  %1949 = vmatpush1.msra.mxu0 0.0
  %1950 = vmatprep.subr.mxu0 0.0
  %1951 = vmatpush1.msra.mxu0 0.0
  %1952 = vmatprep.subr.mxu0 0.0
  %1953 = vmatpush1.msra.mxu0 0.0
  %1954 = vmatprep.subr.mxu0 0.0
  %1955 = vmatpush1.msra.mxu0 0.0
  %1956 = vmatprep.subr.mxu0 0.0
  %1957 = vmatpush1.msra.mxu0 0.0
  %1958 = vmatprep.subr.mxu0 0.0
  %1959 = vmatpush1.msra.mxu0 0.0
  %1960 = vmatprep.subr.mxu0 0.0
  %1961 = vmatpush1.msra.mxu0 0.0
  %1962 = vmatprep.subr.mxu0 0.0
  %1963 = vmatpush1.msra.mxu0 0.0
  %1964 = vmatprep.subr.mxu0 0.0
  %1965 = vmatpush1.msra.mxu0 0.0
  %1966 = vmatprep.subr.mxu0 0.0
  %1967 = vmatpush1.msra.mxu0 0.0
  %1968 = vmatprep.subr.mxu0 0.0
  %1969 = vmatpush1.msra.mxu0 0.0
  %1970 = vmatprep.subr.mxu0 0.0
  %1971 = vmatpush1.msra.mxu0 0.0
  %1972 = vmatprep.subr.mxu0 0.0
  %1973 = vmatpush1.msra.mxu0 0.0
  %1974 = vmatprep.subr.mxu0 0.0
  %1975 = vmatpush1.msra.mxu0 0.0
  %1976 = vmatprep.subr.mxu0 0.0
  %1977 = vmatpush1.msra.mxu0 0.0
  %1978 = vmatprep.subr.mxu0 0.0
  %1979 = vmatpush1.msra.mxu0 0.0
  %1980 = vmatprep.subr.mxu0 0.0
  %1981 = vmatpush1.msra.mxu0 0.0
  %1982 = vmatprep.subr.mxu0 0.0
  %1983 = vmatpush1.msra.mxu0 0.0
  %1984 = vmatprep.subr.mxu0 0.0
  %1985 = vmatpush1.msra.mxu0 0.0
  %1986 = vmatprep.subr.mxu0 0.0
  %1987 = vmatpush1.msra.mxu0 0.0
  %1988 = vmatprep.subr.mxu0 0.0
  %1989 = vmatpush1.msra.mxu0 0.0
  %1990 = vmatprep.subr.mxu0 0.0
  %1991 = vmatpush1.msra.mxu0 0.0
  %1992 = vmatprep.subr.mxu0 0.0
  %1993 = vmatpush1.msra.mxu0 0.0
  %1994 = vmatprep.subr.mxu0 0.0
  %1995 = vmatpush1.msra.mxu0 0.0
  %1996 = vmatprep.mubr.f32.mxu0 0.0
  %1997 = vmatmul.mubr.f32.gmra.mrb[0].mxu0 %v1930
  %v1998 = vpop.f32.mrb[0].mxu0
  %v1999 = vadd.f32 %v1898, %v1998
  %v2000 = vpop.f32.mrb[0].mxu0
  %2001 = vdwg.mxu0
  %v2002 = vxor.u32 %v1999, 2147483648
  %v2003 = vmul.f32 %v2002, 1.442695
  %v2004 = vpow.pop %v2003
  %v2005 = vadd.f32 %v2004, 1.0
  %v2006 = vrcp.pop %v2005
  %v2007 = vmul.f32 1.0, %v2006
  %v2008 = vtanh.pop %v1999
  %v2009 = vsel %vm353, %v2008, %v2007
  %v2010 = vmul.f32 %v2009, %v1813
  %2012 = vrot.lane.b32.xlu0 %v2009, 64
  %v2013 = vpop.permute.xlu0 %2012
  %v2015 = vmul.f32 %v2009, %v2013
  %2017 = vrot.lane.b32.xlu0 %v2015, 32
  %v2018 = vpop.permute.xlu0 %2017
  %v2020 = vadd.f32 %v2010, %v2018
  %v2021 = vtanh.pop %v2020
  %2023 = vrot.lane.b32.xlu0 %v2021, 64
  %v2024 = vpop.permute.xlu0 %2023
  %v2026 = vmul.f32 %v2009, %v2024
  %2027 = vrot.lane.b32.xlu0 %v577, 32
  %v2028 = vpop.permute.xlu0 %2027
  %2030 = vrot.lane.b32.xlu0 %v991, 96
  %v2031 = vpop.permute.xlu0 %2030
  %2033 = vrot.lane.b32.xlu0 %v1405, 32
  %v2034 = vpop.permute.xlu0 %2033
  %2036 = vrot.lane.b32.xlu0 %v1819, 96
  %v2037 = vpop.permute.xlu0 %2036
  %v2039 = vsel %vm141, %v2028, %v788
  %v2040 = vsel %vm47, %v2039, %v2031
  %vm2041 = vcmask 785408
  %v2042 = vsel %vm2041, %v2040, %v1198
  %v2043 = vsel %vm141, %v2034, %v1616
  %v2044 = vsel %vm47, %v2043, %v2037
  %v2045 = vsel %vm2041, %v2044, %v2026
  %2046 = vst [vmem:[%s8] sm:$0xff] %v2042
  %2047 = vst [vmem:[%s8 + $0x8] sm:$0xff] %v2045
  %2050 = vrot.lane.b32.xlu0 %v2026, 64
  %v2051 = vpop.permute.xlu0 %2050
  %2054 = vrot.lane.b32.xlu0 %v1920, 32
  %v2055 = vpop.permute.xlu0 %2054
  %2058 = vrot.lane.b32.xlu0 %v2020, 64
  %v2059 = vpop.permute.xlu0 %2058
  %v2061 = vsel %vm141, %v1929, %v2051
  %v2062 = vsel %vm47, %v2061, %v2055
  %v2063 = vsel %vm2041, %v2062, %v2059
  %2064 = vst [vmem:[%s9] sm:$0xff] %v2063
  // Predicated region
  $region34: #{allimg_core_sequence.1} parent=0 // pred_check
    _
  $region35: #{allimg_core_sequence.1} parent=0 // pred_check_branch
    %2066 = sbr.rel (0) target = $region37
  $region36: #{allimg_core_sequence.1} parent=0 // pred_region
    _
  $region37: #{allimg_core_sequence.1} parent=0 // pred_fallthru
    _
  // Predicated region
  $region38: #{allimg_core_sequence.1} parent=0 // pred_check
    _
  $region39: #{allimg_core_sequence.1} parent=0 // pred_check_branch
    %2068 = sbr.rel (0) target = $region41
  $region40: #{allimg_core_sequence.1} parent=0 // pred_region
    _
  $region41: #{allimg_core_sequence.1} parent=0 // pred_fallthru
    _
  // Predicated region
  $region42: #{allimg_core_sequence.1} parent=0 // pred_check
    _
  $region43: #{allimg_core_sequence.1} parent=0 // pred_check_branch
    %2070 = sbr.rel (0) target = $region45
  $region44: #{allimg_core_sequence.1} parent=0 // pred_region
    _
  $region45: #{allimg_core_sequence.1} parent=0 // pred_fallthru
    _
  // Predicated region
  $region46: #{allimg_core_sequence.1} parent=0 // pred_check
    _
  $region47: #{allimg_core_sequence.1} parent=0 // pred_check_branch
    %2072 = sbr.rel (0) target = $region49
  $region48: #{allimg_core_sequence.1} parent=0 // pred_region
    _
  $region49: #{allimg_core_sequence.1} parent=0 // pred_fallthru
    _

</llo_original>
